<compile_context>
chip_gen: v5e
topology: v5e:2x2
jax: 0.10.0
libtpu: 0.0.40
codegen_flags: <defaults>
</compile_context>

<pallas_src>
import functools

import jax
import jax.numpy as jnp
from jax.experimental import pallas as pl
from jax.experimental.pallas import tpu as pltpu

_EPS = 1e-5          # nn.BatchNorm2d default
_TK_MAX = 1152       # max K elements per reduction step (bf16 operands)
_LANE = 128


def _vmem_limit_bytes():
    """Generation-aware scoped-VMEM cap (v7x: 64 MiB phys, v5e/v6e: 128 MiB)."""
    try:
        cap = pltpu.get_tpu_info().vmem_capacity_bytes
    except Exception:
        cap = 64 * 1024 * 1024
    return min(96 * 1024 * 1024, max(32 * 1024 * 1024, cap // 2))


_VMEM_LIMIT = _vmem_limit_bytes()


def _vmem():
    return pl.BlockSpec(memory_space=pltpu.MemorySpace.VMEM)


def _largest_tile(dim, max_tile, align):
    """Largest divisor of dim that is a multiple of align and <= max_tile."""
    if dim <= max_tile:
        return dim
    t = (max_tile // align) * align
    while t >= align:
        if dim % t == 0:
            return t
        t -= align
    return dim  # fall back to one full block (fine at these sizes)


# ------------- fused conv-matmul + BatchNorm (+residual) (+ReLU) --------------

def _conv_bn_kernel(a_ref, b_ref, g_ref, bt_ref, o_ref, acc_ref, *, relu):
    k = pl.program_id(1)

    @pl.when(k == 0)
    def _():
        acc_ref[...] = jnp.zeros_like(acc_ref)

    acc_ref[...] += jnp.dot(a_ref[...], b_ref[...],
                            preferred_element_type=jnp.float32)

    @pl.when(k == pl.num_programs(1) - 1)
    def _():
        acc = acc_ref[...]                                   # (M, tn) f32
        inv_m = 1.0 / acc.shape[0]
        mean = jnp.sum(acc, axis=0, keepdims=True) * inv_m
        var = jnp.maximum(
            jnp.sum(acc * acc, axis=0, keepdims=True) * inv_m - mean * mean,
            0.0)                                             # biased, clamped
        scale = g_ref[...] * jax.lax.rsqrt(var + _EPS)       # EUP rsqrt
        shift = bt_ref[...] - mean * scale
        y = acc * scale + shift
        if relu:
            y = jnp.maximum(y, 0.0)
        o_ref[...] = y.astype(o_ref.dtype)


def _conv_bn_res_kernel(a_ref, b_ref, g_ref, bt_ref, r_ref, o_ref, acc_ref, *,
                        relu):
    k = pl.program_id(1)

    @pl.when(k == 0)
    def _():
        acc_ref[...] = jnp.zeros_like(acc_ref)

    acc_ref[...] += jnp.dot(a_ref[...], b_ref[...],
                            preferred_element_type=jnp.float32)

    @pl.when(k == pl.num_programs(1) - 1)
    def _():
        acc = acc_ref[...]
        inv_m = 1.0 / acc.shape[0]
        mean = jnp.sum(acc, axis=0, keepdims=True) * inv_m
        var = jnp.maximum(
            jnp.sum(acc * acc, axis=0, keepdims=True) * inv_m - mean * mean,
            0.0)
        scale = g_ref[...] * jax.lax.rsqrt(var + _EPS)
        shift = bt_ref[...] - mean * scale
        y = acc * scale + shift + r_ref[...].astype(jnp.float32)
        if relu:
            y = jnp.maximum(y, 0.0)
        o_ref[...] = y.astype(o_ref.dtype)


def conv_bn_fused(patches, wmat, gamma, beta, relu, residual2d=None):
    """(M,K)x(K,C) conv-matmul with fused BN(+res)(+ReLU). Returns (M,C) bf16."""
    m, k = patches.shape
    k2, c = wmat.shape
    assert k == k2
    # Global BN stats are computed inside the kernel over the full M rows, so
    # M is a single (un-tiled) block.  Fine for these shapes (M <= 512).
    assert m <= 2048, "fused-BN path needs full M resident in one block"

    tn = c if c <= _LANE else _LANE        # Cout split for megacore / weights
    gn = c // tn
    tk = _largest_tile(k, _TK_MAX, _LANE)  # K reduction tiling (only layer3)
    gk = k // tk

    cost = pl.CostEstimate(
        flops=2 * m * k * c,
        transcendentals=c,
        bytes_accessed=(m * k + k * c + m * c
                        + (m * c if residual2d is not None else 0)) * 2)

    a_spec = pl.BlockSpec((m, tk), lambda j, kk: (0, kk))
    b_spec = pl.BlockSpec((tk, tn), lambda j, kk: (kk, j))
    v_spec = pl.BlockSpec((1, tn), lambda j, kk: (0, j))
    o_spec = pl.BlockSpec((m, tn), lambda j, kk: (0, j))

    if residual2d is None:
        kern = functools.partial(_conv_bn_kernel, relu=relu)
        in_specs = [a_spec, b_spec, v_spec, v_spec]
        operands = (patches, wmat, gamma, beta)
    else:
        kern = functools.partial(_conv_bn_res_kernel, relu=relu)
        in_specs = [a_spec, b_spec, v_spec, v_spec,
                    pl.BlockSpec((m, tn), lambda j, kk: (0, j))]
        operands = (patches, wmat, gamma, beta, residual2d)

    return pl.pallas_call(
        kern,
        out_shape=jax.ShapeDtypeStruct((m, c), jnp.bfloat16),
        grid_spec=pltpu.PrefetchScalarGridSpec(
            num_scalar_prefetch=0,
            grid=(gn, gk),
            in_specs=in_specs,
            out_specs=o_spec,
            scratch_shapes=[pltpu.VMEM((m, tn), jnp.float32)]),
        compiler_params=pltpu.CompilerParams(
            dimension_semantics=("parallel", "arbitrary"),
            vmem_limit_bytes=_VMEM_LIMIT),
        cost_estimate=cost,
    )(*operands)


# ---------------------- global avg-pool + FC (fused) --------------------------

def _pool_fc_kernel(x_ref, w_ref, b_ref, o_ref):
    pooled = jnp.mean(x_ref[...].astype(jnp.float32), axis=1)        # (N, C)
    o_ref[...] = jnp.dot(pooled, w_ref[...],
                         preferred_element_type=jnp.float32) + b_ref[...]


def pallas_pool_fc(x, w, b):  # x: (N, H*W, C) bf16, w: (C, 128), b: (1, 128)
    n = x.shape[0]
    cols = w.shape[1]
    return pl.pallas_call(
        _pool_fc_kernel,
        out_shape=jax.ShapeDtypeStruct((n, cols), jnp.float32),
        in_specs=[_vmem(), _vmem(), _vmem()],
        out_specs=_vmem(),
        compiler_params=pltpu.CompilerParams(vmem_limit_bytes=_VMEM_LIMIT),
    )(x, w, b)


# ------------------------------- JAX glue -------------------------------------

def _im2col(x, ksize, stride, padding):
    """x: (N,H,W,C) bf16 -> patches (N*Ho*Wo, ksize*ksize*C), tap order (ki,kj,c)."""
    n, h, w, c = x.shape
    xp = jnp.pad(x, ((0, 0), (padding, padding), (padding, padding), (0, 0)))
    ho = (h + 2 * padding - ksize) // stride + 1
    wo = (w + 2 * padding - ksize) // stride + 1
    cols = []
    for di in range(ksize):
        for dj in range(ksize):
            cols.append(xp[:, di:di + stride * ho:stride,
                           dj:dj + stride * wo:stride, :])
    patches = jnp.concatenate(cols, axis=-1)
    return patches.reshape(n * ho * wo, ksize * ksize * c), ho, wo


def conv_bn_act(x_nhwc, conv_p, gamma, beta, stride, padding, relu,
                residual=None):
    """Conv2d(bias=False) + BatchNorm2d (batch stats) + residual + ReLU."""
    n = x_nhwc.shape[0]
    wmat = conv_p['w']                        # (K_pad, Cout) bf16
    ksize = conv_p['k']
    cout = wmat.shape[1]
    patches, ho, wo = _im2col(x_nhwc, ksize, stride, padding)
    kdim = wmat.shape[0]
    if patches.shape[1] != kdim:              # K zero-padded to multiple of 128
        patches = jnp.pad(patches, ((0, 0), (0, kdim - patches.shape[1])))
    res2d = None if residual is None else residual.reshape(-1, cout)
    y = conv_bn_fused(patches, wmat, gamma, beta, relu, res2d)
    return y.reshape(n, ho, wo, cout)


def residual_block(x, p):
    s = p['stride']
    out = conv_bn_act(x, p['conv1'], p['g1'], p['b1'], s, 1, relu=True)
    if 'convs' in p:  # projection shortcut: 1x1 conv + BN
        sc = conv_bn_act(x, p['convs'], p['gs'], p['bs'], s, 0, relu=False)
    else:             # identity shortcut
        sc = x
    # out = relu(bn2(conv2(out)) + shortcut(x))
    out = conv_bn_act(out, p['conv2'], p['g2'], p['b2'], 1, 1, relu=True,
                      residual=sc)
    return out


def forward(x_nchw, pp):
    # NCHW -> NHWC; activations kept in bf16 between layers (stats/acc in f32)
    x = jnp.transpose(x_nchw, (0, 2, 3, 1)).astype(jnp.bfloat16)
    out = conv_bn_act(x, pp['conv1'], pp['bn1_g'], pp['bn1_b'], 1, 1, relu=True)
    for layer in ('layer1', 'layer2', 'layer3'):
        for blk in pp[layer]:
            out = residual_block(out, blk)
    n, h, w, c = out.shape
    # AdaptiveAvgPool2d((1,1)) + flatten + Linear, fused in one kernel
    logits = pallas_pool_fc(out.reshape(n, h * w, c), pp['fc_w'], pp['fc_b'])
    return logits[:, :pp['num_classes']]


# ----------------------- one-time parameter preprocessing ---------------------

def _prep_conv_weight(w_oihw):
    cout, cin, kh, kw = w_oihw.shape
    # PyTorch OIHW -> (kh*kw*cin, cout), matching im2col's (ki,kj,c) ordering
    wmat = jnp.transpose(w_oihw, (2, 3, 1, 0)).reshape(kh * kw * cin, cout)
    pad = (-wmat.shape[0]) % _LANE            # lane-aligned K
    if pad:
        wmat = jnp.pad(wmat, ((0, pad), (0, 0)))
    return {'w': wmat.astype(jnp.bfloat16), 'k': kh}


def _prep_bn(g, b):
    return (g.reshape(1, -1).astype(jnp.float32),
            b.reshape(1, -1).astype(jnp.float32))


def prepare_params(params):
    num_classes = params['fc_w'].shape[0]
    fc_w = jnp.transpose(params['fc_w']).astype(jnp.float32)   # (256, ncls)
    fc_b = params['fc_b'].reshape(1, -1).astype(jnp.float32)
    pad_cols = (-num_classes) % _LANE                          # lane-dense FC
    if pad_cols:
        fc_w = jnp.pad(fc_w, ((0, 0), (0, pad_cols)))
        fc_b = jnp.pad(fc_b, ((0, 0), (0, pad_cols)))

    bn1_g, bn1_b = _prep_bn(params['bn1_g'], params['bn1_b'])
    pp = {
        'conv1': _prep_conv_weight(params['conv1_w']),
        'bn1_g': bn1_g, 'bn1_b': bn1_b,
        'fc_w': fc_w, 'fc_b': fc_b,
        'num_classes': num_classes,
    }
    for layer in ('layer1', 'layer2', 'layer3'):
        blocks = []
        for blk in params[layer]:
            g1, b1 = _prep_bn(blk['g1'], blk['b1'])
            g2, b2 = _prep_bn(blk['g2'], blk['b2'])
            b = {
                'stride': blk['stride'],
                'conv1': _prep_conv_weight(blk['w1']), 'g1': g1, 'b1': b1,
                'conv2': _prep_conv_weight(blk['w2']), 'g2': g2, 'b2': b2,
            }
            if 'ws' in blk:
                gs, bs = _prep_bn(blk['gs'], blk['bs'])
                b['convs'] = _prep_conv_weight(blk['ws'])
                b['gs'] = gs
                b['bs'] = bs
            blocks.append(b)
        pp[layer] = blocks
    return pp


# --------------------------- deterministic init --------------------------------

def init_params(key, num_classes=10):
    keys = list(jax.random.split(key, 16))
    ki = iter(keys)

    def conv_w(k, cout, cin, ks):
        fan_in = cin * ks * ks
        return jax.random.normal(k, (cout, cin, ks, ks), jnp.float32) * (fan_in ** -0.5)

    def block(k, cin, cout, stride):
        k1, k2, k3 = jax.random.split(k, 3)
        p = {
            'stride': stride,
            'w1': conv_w(k1, cout, cin, 3),
            'g1': jnp.ones((cout,), jnp.float32),
            'b1': jnp.zeros((cout,), jnp.float32),
            'w2': conv_w(k2, cout, cout, 3),
            'g2': jnp.ones((cout,), jnp.float32),
            'b2': jnp.zeros((cout,), jnp.float32),
        }
        if stride != 1 or cin != cout:
            p['ws'] = conv_w(k3, cout, cin, 1)
            p['gs'] = jnp.ones((cout,), jnp.float32)
            p['bs'] = jnp.zeros((cout,), jnp.float32)
        return p

    params = {
        'conv1_w': conv_w(next(ki), 64, 3, 3),
        'bn1_g': jnp.ones((64,), jnp.float32),
        'bn1_b': jnp.zeros((64,), jnp.float32),
        'layer1': [block(next(ki), 64, 64, 1), block(next(ki), 64, 64, 1)],
        'layer2': [block(next(ki), 64, 128, 2), block(next(ki), 128, 128, 1)],
        'layer3': [block(next(ki), 128, 256, 2), block(next(ki), 256, 256, 1)],
        'fc_w': jax.random.normal(next(ki), (num_classes, 256), jnp.float32) * (256 ** -0.5),
        'fc_b': jnp.zeros((num_classes,), jnp.float32),
    }
    return params


if __name__ == "__main__":
    key = jax.random.PRNGKey(0)
    pkey, xkey = jax.random.split(key)
    params = init_params(pkey, num_classes=10)
    prepped = prepare_params(params)
    # PyTorch-style NCHW input: batch=2, channels=3, spatial 16x16
    x = jax.random.normal(xkey, (2, 3, 16, 16), jnp.float32)
    logits = forward(x, prepped)
    logits = jax.block_until_ready(logits)
    assert logits.shape == (2, 10)
    assert bool(jnp.all(jnp.isfinite(logits)))
    print("KERNEL_OK")
</pallas_src>

<mosaic_0001>
module attributes {stable_mosaic.version = 11 : i64} {
  func.func @_conv_bn_kernel(%arg0: i32, %arg1: i32, %arg2: memref<512x128xbf16, #tpu.memory_space<vmem>>, %arg3: memref<128x64xbf16, #tpu.memory_space<vmem>>, %arg4: memref<1x64xf32, #tpu.memory_space<vmem>>, %arg5: memref<1x64xf32, #tpu.memory_space<vmem>>, %arg6: memref<512x64xbf16, #tpu.memory_space<vmem>>, %arg7: memref<512x64xf32, #tpu.memory_space<vmem>>) attributes {dimension_semantics = [#tpu.dimension_semantics<parallel>, #tpu.dimension_semantics<arbitrary>], iteration_bounds = array<i64: 1, 1>, scalar_prefetch = 0 : i64, scratch_operands = 1 : i64, tpu.core_type = #tpu.core_type<tc>, window_params = [{transform_indices = @transform_0, window_bounds = array<i64: 512, 128>}, {transform_indices = @transform_1, window_bounds = array<i64: 128, 64>}, {transform_indices = @transform_2, window_bounds = array<i64: 1, 64>}, {transform_indices = @transform_3, window_bounds = array<i64: 1, 64>}, {transform_indices = @transform_4, window_bounds = array<i64: 512, 64>}]} {
    %c0_i32 = arith.constant 0 : i32
    %0 = arith.cmpi eq, %arg1, %c0_i32 : i32
    %1 = arith.extui %0 : i1 to i32
    %c0_i32_0 = arith.constant 0 : i32
    %2 = arith.cmpi ne, %1, %c0_i32_0 : i32
    scf.if %2 {
      %cst_10 = arith.constant 0.000000e+00 : f32
      %12 = vector.broadcast %cst_10 : f32 to vector<512x64xf32>
      %c0_11 = arith.constant 0 : index
      %c0_12 = arith.constant 0 : index
      %13 = vector.load %arg7[%c0_11, %c0_12] : memref<512x64xf32, #tpu.memory_space<vmem>>, vector<512x64xf32>
      tpu.vector_store %arg7[%c0_11, %c0_12], %12 {strides = array<i32>} : memref<512x64xf32, #tpu.memory_space<vmem>>, vector<512x64xf32>,
    } else {
    }
    %c0 = arith.constant 0 : index
    %c0_1 = arith.constant 0 : index
    %3 = vector.load %arg7[%c0, %c0_1] : memref<512x64xf32, #tpu.memory_space<vmem>>, vector<512x64xf32>
    %c0_2 = arith.constant 0 : index
    %c0_3 = arith.constant 0 : index
    %4 = vector.load %arg2[%c0_2, %c0_3] : memref<512x128xbf16, #tpu.memory_space<vmem>>, vector<512x128xbf16>
    %c0_4 = arith.constant 0 : index
    %c0_5 = arith.constant 0 : index
    %5 = vector.load %arg3[%c0_4, %c0_5] : memref<128x64xbf16, #tpu.memory_space<vmem>>, vector<128x64xbf16>
    %cst = arith.constant dense<0.000000e+00> : vector<512x64xf32>
    %6 = tpu.matmul %4, %5, %cst {dimension_numbers = #tpu.dot_dimension_numbers<[1], [0], [0], [1], [0, 0, 1, 1], [], []>} : vector<512x128xbf16>, vector<128x64xbf16>, vector<512x64xf32> -> vector<512x64xf32>
    %7 = arith.addf %3, %6 : vector<512x64xf32>
    %c0_6 = arith.constant 0 : index
    %c0_7 = arith.constant 0 : index
    %8 = vector.load %arg7[%c0_6, %c0_7] : memref<512x64xf32, #tpu.memory_space<vmem>>, vector<512x64xf32>
    tpu.vector_store %arg7[%c0_6, %c0_7], %7 {strides = array<i32>} : memref<512x64xf32, #tpu.memory_space<vmem>>, vector<512x64xf32>,
    %c0_i32_8 = arith.constant 0 : i32
    %9 = arith.cmpi eq, %arg1, %c0_i32_8 : i32
    %10 = arith.extui %9 : i1 to i32
    %c0_i32_9 = arith.constant 0 : i32
    %11 = arith.cmpi ne, %10, %c0_i32_9 : i32
    scf.if %11 {
      %c0_10 = arith.constant 0 : index
      %c0_11 = arith.constant 0 : index
      %12 = vector.load %arg7[%c0_10, %c0_11] : memref<512x64xf32, #tpu.memory_space<vmem>>, vector<512x64xf32>
      %cst_12 = arith.constant dense<0.000000e+00> : vector<64xf32>
      %13 = vector.multi_reduction <add>, %12, %cst_12 [0] : vector<512x64xf32> to vector<64xf32>
      %14 = vector.shape_cast %13 : vector<64xf32> to vector<1x64xf32>
      %cst_13 = arith.constant 0.001953125 : f32
      %15 = vector.broadcast %cst_13 : f32 to vector<1x64xf32>
      %16 = arith.mulf %14, %15 : vector<1x64xf32>
      %17 = arith.mulf %12, %12 : vector<512x64xf32>
      %cst_14 = arith.constant dense<0.000000e+00> : vector<64xf32>
      %18 = vector.multi_reduction <add>, %17, %cst_14 [0] : vector<512x64xf32> to vector<64xf32>
      %19 = vector.shape_cast %18 : vector<64xf32> to vector<1x64xf32>
      %cst_15 = arith.constant 0.001953125 : f32
      %20 = vector.broadcast %cst_15 : f32 to vector<1x64xf32>
      %21 = arith.mulf %19, %20 : vector<1x64xf32>
      %22 = arith.mulf %16, %16 : vector<1x64xf32>
      %23 = arith.subf %21, %22 : vector<1x64xf32>
      %cst_16 = arith.constant 0.000000e+00 : f32
      %24 = vector.broadcast %cst_16 : f32 to vector<1x64xf32>
      %25 = arith.maximumf %23, %24 : vector<1x64xf32>
      %c0_17 = arith.constant 0 : index
      %c0_18 = arith.constant 0 : index
      %26 = vector.load %arg4[%c0_17, %c0_18] : memref<1x64xf32, #tpu.memory_space<vmem>>, vector<1x64xf32>
      %cst_19 = arith.constant 9.99999974E-6 : f32
      %27 = vector.broadcast %cst_19 : f32 to vector<1x64xf32>
      %28 = arith.addf %25, %27 : vector<1x64xf32>
      %29 = math.rsqrt %28 : vector<1x64xf32>
      %30 = arith.mulf %26, %29 : vector<1x64xf32>
      %c0_20 = arith.constant 0 : index
      %c0_21 = arith.constant 0 : index
      %31 = vector.load %arg5[%c0_20, %c0_21] : memref<1x64xf32, #tpu.memory_space<vmem>>, vector<1x64xf32>
      %32 = arith.mulf %16, %30 : vector<1x64xf32>
      %33 = arith.subf %31, %32 : vector<1x64xf32>
      %34 = vector.broadcast %30 : vector<1x64xf32> to vector<512x64xf32>
      %35 = arith.mulf %12, %34 : vector<512x64xf32>
      %36 = vector.broadcast %33 : vector<1x64xf32> to vector<512x64xf32>
      %37 = arith.addf %35, %36 : vector<512x64xf32>
      %cst_22 = arith.constant 0.000000e+00 : f32
      %38 = vector.broadcast %cst_22 : f32 to vector<512x64xf32>
      %39 = arith.maximumf %37, %38 : vector<512x64xf32>
      %40 = arith.truncf %39 : vector<512x64xf32> to vector<512x64xbf16>
      %c0_23 = arith.constant 0 : index
      %c0_24 = arith.constant 0 : index
      %41 = vector.load %arg6[%c0_23, %c0_24] : memref<512x64xbf16, #tpu.memory_space<vmem>>, vector<512x64xbf16>
      tpu.vector_store %arg6[%c0_23, %c0_24], %40 {strides = array<i32>} : memref<512x64xbf16, #tpu.memory_space<vmem>>, vector<512x64xbf16>,
    } else {
    }
    return
  }
  func.func @transform_0(%arg0: i32, %arg1: i32) -> (i32, i32) {
    %c0_i32 = arith.constant 0 : i32
    %c0_i32_0 = arith.constant 0 : i32
    return %c0_i32, %arg1 : i32, i32
  }
  func.func @transform_1(%arg0: i32, %arg1: i32) -> (i32, i32) {
    %c0_i32 = arith.constant 0 : i32
    return %arg1, %arg0 : i32, i32
  }
  func.func @transform_2(%arg0: i32, %arg1: i32) -> (i32, i32) {
    %c0_i32 = arith.constant 0 : i32
    %c0_i32_0 = arith.constant 0 : i32
    return %c0_i32, %arg0 : i32, i32
  }
  func.func @transform_3(%arg0: i32, %arg1: i32) -> (i32, i32) {
    %c0_i32 = arith.constant 0 : i32
    %c0_i32_0 = arith.constant 0 : i32
    return %c0_i32, %arg0 : i32, i32
  }
  func.func @transform_4(%arg0: i32, %arg1: i32) -> (i32, i32) {
    %c0_i32 = arith.constant 0 : i32
    %c0_i32_0 = arith.constant 0 : i32
    return %c0_i32, %arg0 : i32, i32
  }
}

</mosaic_0001>

<llo_original>
// kernel: tpu_custom_call.1
$region0: #{tpu_custom_call.1}
  #allocation0 [shape = 'u32[]', space=smem, size = 0x4, offset = 0x4, fixed_abs, tag = 'smem constant byte address 0x4 - core index']
  #allocation1 [shape = 'u32[72,128]{1,0:T(1,128)}', space=vmem, size = 0x9000, scoped, tag = 'internal scratch']
  #allocation2 [shape = 'f32[512,64]{1,0:T(8,128)}', space=vmem, size = 0x40000, scoped, tag = 'scratch operand']
  %s0 = inlined_call_operand.hbm [shape: bf16[512,128], index: 0, kind: input, shape index: {}]
  %s1 = inlined_call_operand.vmem [shape: bf16[128,64], index: 1, kind: input, shape index: {}]
  %s2 = inlined_call_operand.vmem [shape: f32[1,64], index: 2, kind: input, shape index: {}]
  %s3 = inlined_call_operand.vmem [shape: f32[1,64], index: 3, kind: input, shape index: {}]
  %s4 = inlined_call_operand.vmem [shape: bf16[512,64], index: 4, kind: output, shape index: {}]
  %s5 = sld [smem:[#allocation0]]
  $region38: #{tpu_custom_call.1} parent=0
    _
  %s7 = ssub.s32 1, %s5
  %s8 = scalar_select 0, %s7, %s5
  $region1: #{tpu_custom_call.1} parent=0
    #allocation3 [shape = 'u8[131072]{0}', space=vmem, size = 0x20000, scoped, tag = 'input window, operand 0, single buffered']
    #allocation4 [shape = 's32[1]{0}', space=sflag, size = 0x4, scoped, tag = 'scoped memory for tpu_custom_call.1']
    %9 = vsyncpa [#allocation4], 0
    // Predicated region
    $region2: #{tpu_custom_call.1} parent=1 // pred_check
      _
    $region3: #{tpu_custom_call.1} parent=1 // pred_check_branch
      %11 = sbr.rel (0) target = $region5
    $region4: #{tpu_custom_call.1} parent=1 // pred_region
      %13 = vsyncadd [#allocation4], 0
      %s14 = sshll.u32 %s0, 4
      %s15 = int_to_ptr.hbm [resolvable:$true] %s14
      %s16 = sshll.u32 [#allocation3], 4
      %s17 = int_to_ptr.vmem [resolvable:$true] %s16
      %22 = dma.hbm_to_vmem [thread:$0]  %s15, 4096, %s17, [#allocation4], 64, 64, 4
    $region5: #{tpu_custom_call.1} parent=1 // pred_fallthru
      _
    // Predicated region
    $region6: #{tpu_custom_call.1} parent=1 // pred_check
      _
    $region7: #{tpu_custom_call.1} parent=1 // pred_check_branch
      %24 = sbr.rel (0) target = $region9
    $region8: #{tpu_custom_call.1} parent=1 // pred_region
      _
    $region9: #{tpu_custom_call.1} parent=1 // pred_fallthru
      _
    // Predicated region
    $region10: #{tpu_custom_call.1} parent=1 // pred_check
      _
    $region11: #{tpu_custom_call.1} parent=1 // pred_check_branch
      %26 = sbr.rel (0) target = $region13
    $region12: #{tpu_custom_call.1} parent=1 // pred_region
      _
    $region13: #{tpu_custom_call.1} parent=1 // pred_fallthru
      _
    // Predicated region
    $region14: #{tpu_custom_call.1} parent=1 // pred_check
      _
    $region15: #{tpu_custom_call.1} parent=1 // pred_check_branch
      %28 = sbr.rel (0) target = $region17
    $region16: #{tpu_custom_call.1} parent=1 // pred_region
      _
    $region17: #{tpu_custom_call.1} parent=1 // pred_fallthru
      _
    // Predicated region
    $region18: #{tpu_custom_call.1} parent=1 // pred_check
      _
    $region19: #{tpu_custom_call.1} parent=1 // pred_check_branch
      %30 = sbr.rel (0) target = $region21
    $region20: #{tpu_custom_call.1} parent=1 // pred_region
      %32 = dma.done [#allocation4], 4096
    $region21: #{tpu_custom_call.1} parent=1 // pred_fallthru
      _
    %p33 = scmp.eq.s32.totalorder 0, 0
    // Predicated region
    $region22: #{tpu_custom_call.1} parent=1 // pred_check
      %p34 = pneg %p33
    $region23: #{tpu_custom_call.1} parent=1 // pred_check_branch
      %36 = sbr.rel (%p34) target = $region25
    $region24: #{tpu_custom_call.1} parent=1 // pred_region
      %vm37 = vcmask 523264
      %38 = vst.msk [vmem:[#allocation2] sm:$0xff] %vm37, 0.0
      %39 = vst.msk [vmem:[#allocation2 + $0x8] sm:$0xff] %vm37, 0.0
      %40 = vst.msk [vmem:[#allocation2 + $0x10] sm:$0xff] %vm37, 0.0
      %41 = vst.msk [vmem:[#allocation2 + $0x18] sm:$0xff] %vm37, 0.0
      %42 = vst.msk [vmem:[#allocation2 + $0x20] sm:$0xff] %vm37, 0.0
      %43 = vst.msk [vmem:[#allocation2 + $0x28] sm:$0xff] %vm37, 0.0
      %44 = vst.msk [vmem:[#allocation2 + $0x30] sm:$0xff] %vm37, 0.0
      %45 = vst.msk [vmem:[#allocation2 + $0x38] sm:$0xff] %vm37, 0.0
      %46 = vst.msk [vmem:[#allocation2 + $0x40] sm:$0xff] %vm37, 0.0
      %47 = vst.msk [vmem:[#allocation2 + $0x48] sm:$0xff] %vm37, 0.0
      %48 = vst.msk [vmem:[#allocation2 + $0x50] sm:$0xff] %vm37, 0.0
      %49 = vst.msk [vmem:[#allocation2 + $0x58] sm:$0xff] %vm37, 0.0
      %50 = vst.msk [vmem:[#allocation2 + $0x60] sm:$0xff] %vm37, 0.0
      %51 = vst.msk [vmem:[#allocation2 + $0x68] sm:$0xff] %vm37, 0.0
      %52 = vst.msk [vmem:[#allocation2 + $0x70] sm:$0xff] %vm37, 0.0
      %53 = vst.msk [vmem:[#allocation2 + $0x78] sm:$0xff] %vm37, 0.0
      %54 = vst.msk [vmem:[#allocation2 + $0x80] sm:$0xff] %vm37, 0.0
      %55 = vst.msk [vmem:[#allocation2 + $0x88] sm:$0xff] %vm37, 0.0
      %56 = vst.msk [vmem:[#allocation2 + $0x90] sm:$0xff] %vm37, 0.0
      %57 = vst.msk [vmem:[#allocation2 + $0x98] sm:$0xff] %vm37, 0.0
      %58 = vst.msk [vmem:[#allocation2 + $0xa0] sm:$0xff] %vm37, 0.0
      %59 = vst.msk [vmem:[#allocation2 + $0xa8] sm:$0xff] %vm37, 0.0
      %60 = vst.msk [vmem:[#allocation2 + $0xb0] sm:$0xff] %vm37, 0.0
      %61 = vst.msk [vmem:[#allocation2 + $0xb8] sm:$0xff] %vm37, 0.0
      %62 = vst.msk [vmem:[#allocation2 + $0xc0] sm:$0xff] %vm37, 0.0
      %63 = vst.msk [vmem:[#allocation2 + $0xc8] sm:$0xff] %vm37, 0.0
      %64 = vst.msk [vmem:[#allocation2 + $0xd0] sm:$0xff] %vm37, 0.0
      %65 = vst.msk [vmem:[#allocation2 + $0xd8] sm:$0xff] %vm37, 0.0
      %66 = vst.msk [vmem:[#allocation2 + $0xe0] sm:$0xff] %vm37, 0.0
      %67 = vst.msk [vmem:[#allocation2 + $0xe8] sm:$0xff] %vm37, 0.0
      %68 = vst.msk [vmem:[#allocation2 + $0xf0] sm:$0xff] %vm37, 0.0
      %69 = vst.msk [vmem:[#allocation2 + $0xf8] sm:$0xff] %vm37, 0.0
      %70 = vst.msk [vmem:[#allocation2 + $0x100] sm:$0xff] %vm37, 0.0
      %71 = vst.msk [vmem:[#allocation2 + $0x108] sm:$0xff] %vm37, 0.0
      %72 = vst.msk [vmem:[#allocation2 + $0x110] sm:$0xff] %vm37, 0.0
      %73 = vst.msk [vmem:[#allocation2 + $0x118] sm:$0xff] %vm37, 0.0
      %74 = vst.msk [vmem:[#allocation2 + $0x120] sm:$0xff] %vm37, 0.0
      %75 = vst.msk [vmem:[#allocation2 + $0x128] sm:$0xff] %vm37, 0.0
      %76 = vst.msk [vmem:[#allocation2 + $0x130] sm:$0xff] %vm37, 0.0
      %77 = vst.msk [vmem:[#allocation2 + $0x138] sm:$0xff] %vm37, 0.0
      %78 = vst.msk [vmem:[#allocation2 + $0x140] sm:$0xff] %vm37, 0.0
      %79 = vst.msk [vmem:[#allocation2 + $0x148] sm:$0xff] %vm37, 0.0
      %80 = vst.msk [vmem:[#allocation2 + $0x150] sm:$0xff] %vm37, 0.0
      %81 = vst.msk [vmem:[#allocation2 + $0x158] sm:$0xff] %vm37, 0.0
      %82 = vst.msk [vmem:[#allocation2 + $0x160] sm:$0xff] %vm37, 0.0
      %83 = vst.msk [vmem:[#allocation2 + $0x168] sm:$0xff] %vm37, 0.0
      %84 = vst.msk [vmem:[#allocation2 + $0x170] sm:$0xff] %vm37, 0.0
      %85 = vst.msk [vmem:[#allocation2 + $0x178] sm:$0xff] %vm37, 0.0
      %86 = vst.msk [vmem:[#allocation2 + $0x180] sm:$0xff] %vm37, 0.0
      %87 = vst.msk [vmem:[#allocation2 + $0x188] sm:$0xff] %vm37, 0.0
      %88 = vst.msk [vmem:[#allocation2 + $0x190] sm:$0xff] %vm37, 0.0
      %89 = vst.msk [vmem:[#allocation2 + $0x198] sm:$0xff] %vm37, 0.0
      %90 = vst.msk [vmem:[#allocation2 + $0x1a0] sm:$0xff] %vm37, 0.0
      %91 = vst.msk [vmem:[#allocation2 + $0x1a8] sm:$0xff] %vm37, 0.0
      %92 = vst.msk [vmem:[#allocation2 + $0x1b0] sm:$0xff] %vm37, 0.0
      %93 = vst.msk [vmem:[#allocation2 + $0x1b8] sm:$0xff] %vm37, 0.0
      %94 = vst.msk [vmem:[#allocation2 + $0x1c0] sm:$0xff] %vm37, 0.0
      %95 = vst.msk [vmem:[#allocation2 + $0x1c8] sm:$0xff] %vm37, 0.0
      %96 = vst.msk [vmem:[#allocation2 + $0x1d0] sm:$0xff] %vm37, 0.0
      %97 = vst.msk [vmem:[#allocation2 + $0x1d8] sm:$0xff] %vm37, 0.0
      %98 = vst.msk [vmem:[#allocation2 + $0x1e0] sm:$0xff] %vm37, 0.0
      %99 = vst.msk [vmem:[#allocation2 + $0x1e8] sm:$0xff] %vm37, 0.0
      %100 = vst.msk [vmem:[#allocation2 + $0x1f0] sm:$0xff] %vm37, 0.0
      %101 = vst.msk [vmem:[#allocation2 + $0x1f8] sm:$0xff] %vm37, 0.0
    $region25: #{tpu_custom_call.1} parent=1 // pred_fallthru
      _
    %v102 = vld [vmem:[#allocation2] sm:$0xff]
    %v103 = vld [vmem:[#allocation2 + $0x8] sm:$0xff]
    %v104 = vld [vmem:[#allocation2 + $0x10] sm:$0xff]
    %v105 = vld [vmem:[#allocation2 + $0x18] sm:$0xff]
    %v106 = vld [vmem:[#allocation2 + $0x20] sm:$0xff]
    %v107 = vld [vmem:[#allocation2 + $0x28] sm:$0xff]
    %v108 = vld [vmem:[#allocation2 + $0x30] sm:$0xff]
    %v109 = vld [vmem:[#allocation2 + $0x38] sm:$0xff]
    %v110 = vld [vmem:[#allocation2 + $0x40] sm:$0xff]
    %v111 = vld [vmem:[#allocation2 + $0x48] sm:$0xff]
    %v112 = vld [vmem:[#allocation2 + $0x50] sm:$0xff]
    %v113 = vld [vmem:[#allocation2 + $0x58] sm:$0xff]
    %v114 = vld [vmem:[#allocation2 + $0x60] sm:$0xff]
    %v115 = vld [vmem:[#allocation2 + $0x68] sm:$0xff]
    %v116 = vld [vmem:[#allocation2 + $0x70] sm:$0xff]
    %v117 = vld [vmem:[#allocation2 + $0x78] sm:$0xff]
    %v118 = vld [vmem:[#allocation2 + $0x80] sm:$0xff]
    %v119 = vld [vmem:[#allocation2 + $0x88] sm:$0xff]
    %v120 = vld [vmem:[#allocation2 + $0x90] sm:$0xff]
    %v121 = vld [vmem:[#allocation2 + $0x98] sm:$0xff]
    %v122 = vld [vmem:[#allocation2 + $0xa0] sm:$0xff]
    %v123 = vld [vmem:[#allocation2 + $0xa8] sm:$0xff]
    %v124 = vld [vmem:[#allocation2 + $0xb0] sm:$0xff]
    %v125 = vld [vmem:[#allocation2 + $0xb8] sm:$0xff]
    %v126 = vld [vmem:[#allocation2 + $0xc0] sm:$0xff]
    %v127 = vld [vmem:[#allocation2 + $0xc8] sm:$0xff]
    %v128 = vld [vmem:[#allocation2 + $0xd0] sm:$0xff]
    %v129 = vld [vmem:[#allocation2 + $0xd8] sm:$0xff]
    %v130 = vld [vmem:[#allocation2 + $0xe0] sm:$0xff]
    %v131 = vld [vmem:[#allocation2 + $0xe8] sm:$0xff]
    %v132 = vld [vmem:[#allocation2 + $0xf0] sm:$0xff]
    %v133 = vld [vmem:[#allocation2 + $0xf8] sm:$0xff]
    %v134 = vld [vmem:[#allocation2 + $0x100] sm:$0xff]
    %v135 = vld [vmem:[#allocation2 + $0x108] sm:$0xff]
    %v136 = vld [vmem:[#allocation2 + $0x110] sm:$0xff]
    %v137 = vld [vmem:[#allocation2 + $0x118] sm:$0xff]
    %v138 = vld [vmem:[#allocation2 + $0x120] sm:$0xff]
    %v139 = vld [vmem:[#allocation2 + $0x128] sm:$0xff]
    %v140 = vld [vmem:[#allocation2 + $0x130] sm:$0xff]
    %v141 = vld [vmem:[#allocation2 + $0x138] sm:$0xff]
    %v142 = vld [vmem:[#allocation2 + $0x140] sm:$0xff]
    %v143 = vld [vmem:[#allocation2 + $0x148] sm:$0xff]
    %v144 = vld [vmem:[#allocation2 + $0x150] sm:$0xff]
    %v145 = vld [vmem:[#allocation2 + $0x158] sm:$0xff]
    %v146 = vld [vmem:[#allocation2 + $0x160] sm:$0xff]
    %v147 = vld [vmem:[#allocation2 + $0x168] sm:$0xff]
    %v148 = vld [vmem:[#allocation2 + $0x170] sm:$0xff]
    %v149 = vld [vmem:[#allocation2 + $0x178] sm:$0xff]
    %v150 = vld [vmem:[#allocation2 + $0x180] sm:$0xff]
    %v151 = vld [vmem:[#allocation2 + $0x188] sm:$0xff]
    %v152 = vld [vmem:[#allocation2 + $0x190] sm:$0xff]
    %v153 = vld [vmem:[#allocation2 + $0x198] sm:$0xff]
    %v154 = vld [vmem:[#allocation2 + $0x1a0] sm:$0xff]
    %v155 = vld [vmem:[#allocation2 + $0x1a8] sm:$0xff]
    %v156 = vld [vmem:[#allocation2 + $0x1b0] sm:$0xff]
    %v157 = vld [vmem:[#allocation2 + $0x1b8] sm:$0xff]
    %v158 = vld [vmem:[#allocation2 + $0x1c0] sm:$0xff]
    %v159 = vld [vmem:[#allocation2 + $0x1c8] sm:$0xff]
    %v160 = vld [vmem:[#allocation2 + $0x1d0] sm:$0xff]
    %v161 = vld [vmem:[#allocation2 + $0x1d8] sm:$0xff]
    %v162 = vld [vmem:[#allocation2 + $0x1e0] sm:$0xff]
    %v163 = vld [vmem:[#allocation2 + $0x1e8] sm:$0xff]
    %v164 = vld [vmem:[#allocation2 + $0x1f0] sm:$0xff]
    %v165 = vld [vmem:[#allocation2 + $0x1f8] sm:$0xff]
    %v166 = vld [vmem:[#allocation3] sm:$0xf]
    %v167 = vld [vmem:[#allocation3 + $0x4] sm:$0xf]
    %v168 = vld [vmem:[#allocation3 + $0x8] sm:$0xf]
    %v169 = vld [vmem:[#allocation3 + $0xc] sm:$0xf]
    %v170 = vld [vmem:[#allocation3 + $0x10] sm:$0xf]
    %v171 = vld [vmem:[#allocation3 + $0x14] sm:$0xf]
    %v172 = vld [vmem:[#allocation3 + $0x18] sm:$0xf]
    %v173 = vld [vmem:[#allocation3 + $0x1c] sm:$0xf]
    %v174 = vld [vmem:[#allocation3 + $0x20] sm:$0xf]
    %v175 = vld [vmem:[#allocation3 + $0x24] sm:$0xf]
    %v176 = vld [vmem:[#allocation3 + $0x28] sm:$0xf]
    %v177 = vld [vmem:[#allocation3 + $0x2c] sm:$0xf]
    %v178 = vld [vmem:[#allocation3 + $0x30] sm:$0xf]
    %v179 = vld [vmem:[#allocation3 + $0x34] sm:$0xf]
    %v180 = vld [vmem:[#allocation3 + $0x38] sm:$0xf]
    %v181 = vld [vmem:[#allocation3 + $0x3c] sm:$0xf]
    %v182 = vld [vmem:[#allocation3 + $0x40] sm:$0xf]
    %v183 = vld [vmem:[#allocation3 + $0x44] sm:$0xf]
    %v184 = vld [vmem:[#allocation3 + $0x48] sm:$0xf]
    %v185 = vld [vmem:[#allocation3 + $0x4c] sm:$0xf]
    %v186 = vld [vmem:[#allocation3 + $0x50] sm:$0xf]
    %v187 = vld [vmem:[#allocation3 + $0x54] sm:$0xf]
    %v188 = vld [vmem:[#allocation3 + $0x58] sm:$0xf]
    %v189 = vld [vmem:[#allocation3 + $0x5c] sm:$0xf]
    %v190 = vld [vmem:[#allocation3 + $0x60] sm:$0xf]
    %v191 = vld [vmem:[#allocation3 + $0x64] sm:$0xf]
    %v192 = vld [vmem:[#allocation3 + $0x68] sm:$0xf]
    %v193 = vld [vmem:[#allocation3 + $0x6c] sm:$0xf]
    %v194 = vld [vmem:[#allocation3 + $0x70] sm:$0xf]
    %v195 = vld [vmem:[#allocation3 + $0x74] sm:$0xf]
    %v196 = vld [vmem:[#allocation3 + $0x78] sm:$0xf]
    %v197 = vld [vmem:[#allocation3 + $0x7c] sm:$0xf]
    %v198 = vld [vmem:[#allocation3 + $0x80] sm:$0xf]
    %v199 = vld [vmem:[#allocation3 + $0x84] sm:$0xf]
    %v200 = vld [vmem:[#allocation3 + $0x88] sm:$0xf]
    %v201 = vld [vmem:[#allocation3 + $0x8c] sm:$0xf]
    %v202 = vld [vmem:[#allocation3 + $0x90] sm:$0xf]
    %v203 = vld [vmem:[#allocation3 + $0x94] sm:$0xf]
    %v204 = vld [vmem:[#allocation3 + $0x98] sm:$0xf]
    %v205 = vld [vmem:[#allocation3 + $0x9c] sm:$0xf]
    %v206 = vld [vmem:[#allocation3 + $0xa0] sm:$0xf]
    %v207 = vld [vmem:[#allocation3 + $0xa4] sm:$0xf]
    %v208 = vld [vmem:[#allocation3 + $0xa8] sm:$0xf]
    %v209 = vld [vmem:[#allocation3 + $0xac] sm:$0xf]
    %v210 = vld [vmem:[#allocation3 + $0xb0] sm:$0xf]
    %v211 = vld [vmem:[#allocation3 + $0xb4] sm:$0xf]
    %v212 = vld [vmem:[#allocation3 + $0xb8] sm:$0xf]
    %v213 = vld [vmem:[#allocation3 + $0xbc] sm:$0xf]
    %v214 = vld [vmem:[#allocation3 + $0xc0] sm:$0xf]
    %v215 = vld [vmem:[#allocation3 + $0xc4] sm:$0xf]
    %v216 = vld [vmem:[#allocation3 + $0xc8] sm:$0xf]
    %v217 = vld [vmem:[#allocation3 + $0xcc] sm:$0xf]
    %v218 = vld [vmem:[#allocation3 + $0xd0] sm:$0xf]
    %v219 = vld [vmem:[#allocation3 + $0xd4] sm:$0xf]
    %v220 = vld [vmem:[#allocation3 + $0xd8] sm:$0xf]
    %v221 = vld [vmem:[#allocation3 + $0xdc] sm:$0xf]
    %v222 = vld [vmem:[#allocation3 + $0xe0] sm:$0xf]
    %v223 = vld [vmem:[#allocation3 + $0xe4] sm:$0xf]
    %v224 = vld [vmem:[#allocation3 + $0xe8] sm:$0xf]
    %v225 = vld [vmem:[#allocation3 + $0xec] sm:$0xf]
    %v226 = vld [vmem:[#allocation3 + $0xf0] sm:$0xf]
    %v227 = vld [vmem:[#allocation3 + $0xf4] sm:$0xf]
    %v228 = vld [vmem:[#allocation3 + $0xf8] sm:$0xf]
    %v229 = vld [vmem:[#allocation3 + $0xfc] sm:$0xf]
    %v230 = vld [vmem:[%s1] sm:$0xf]
    %v231 = vld [vmem:[%s1 + $0x4] sm:$0xf]
    %v232 = vld [vmem:[%s1 + $0x8] sm:$0xf]
    %v233 = vld [vmem:[%s1 + $0xc] sm:$0xf]
    %v234 = vld [vmem:[%s1 + $0x10] sm:$0xf]
    %v235 = vld [vmem:[%s1 + $0x14] sm:$0xf]
    %v236 = vld [vmem:[%s1 + $0x18] sm:$0xf]
    %v237 = vld [vmem:[%s1 + $0x1c] sm:$0xf]
    %v238 = vld [vmem:[%s1 + $0x20] sm:$0xf]
    %v239 = vld [vmem:[%s1 + $0x24] sm:$0xf]
    %v240 = vld [vmem:[%s1 + $0x28] sm:$0xf]
    %v241 = vld [vmem:[%s1 + $0x2c] sm:$0xf]
    %v242 = vld [vmem:[%s1 + $0x30] sm:$0xf]
    %v243 = vld [vmem:[%s1 + $0x34] sm:$0xf]
    %v244 = vld [vmem:[%s1 + $0x38] sm:$0xf]
    %v245 = vld [vmem:[%s1 + $0x3c] sm:$0xf]
    %v310 = vunpack.c.l.b16 %v166
    %v311 = vunpack.c.l.b16 %v167
    %v312 = vunpack.c.l.b16 %v168
    %v313 = vunpack.c.l.b16 %v169
    %v314 = vunpack.c.l.b16 %v170
    %v315 = vunpack.c.l.b16 %v171
    %v316 = vunpack.c.l.b16 %v172
    %v317 = vunpack.c.l.b16 %v173
    %v318 = vunpack.c.l.b16 %v174
    %v319 = vunpack.c.l.b16 %v175
    %v320 = vunpack.c.l.b16 %v176
    %v321 = vunpack.c.l.b16 %v177
    %v322 = vunpack.c.l.b16 %v178
    %v323 = vunpack.c.l.b16 %v179
    %v324 = vunpack.c.l.b16 %v180
    %v325 = vunpack.c.l.b16 %v181
    %v326 = vunpack.c.l.b16 %v182
    %v327 = vunpack.c.l.b16 %v183
    %v328 = vunpack.c.l.b16 %v184
    %v329 = vunpack.c.l.b16 %v185
    %v330 = vunpack.c.l.b16 %v186
    %v331 = vunpack.c.l.b16 %v187
    %v332 = vunpack.c.l.b16 %v188
    %v333 = vunpack.c.l.b16 %v189
    %v334 = vunpack.c.l.b16 %v190
    %v335 = vunpack.c.l.b16 %v191
    %v336 = vunpack.c.l.b16 %v192
    %v337 = vunpack.c.l.b16 %v193
    %v338 = vunpack.c.l.b16 %v194
    %v339 = vunpack.c.l.b16 %v195
    %v340 = vunpack.c.l.b16 %v196
    %v341 = vunpack.c.l.b16 %v197
    %v342 = vunpack.c.l.b16 %v198
    %v343 = vunpack.c.l.b16 %v199
    %v344 = vunpack.c.l.b16 %v200
    %v345 = vunpack.c.l.b16 %v201
    %v346 = vunpack.c.l.b16 %v202
    %v347 = vunpack.c.l.b16 %v203
    %v348 = vunpack.c.l.b16 %v204
    %v349 = vunpack.c.l.b16 %v205
    %v350 = vunpack.c.l.b16 %v206
    %v351 = vunpack.c.l.b16 %v207
    %v352 = vunpack.c.l.b16 %v208
    %v353 = vunpack.c.l.b16 %v209
    %v354 = vunpack.c.l.b16 %v210
    %v355 = vunpack.c.l.b16 %v211
    %v356 = vunpack.c.l.b16 %v212
    %v357 = vunpack.c.l.b16 %v213
    %v358 = vunpack.c.l.b16 %v214
    %v359 = vunpack.c.l.b16 %v215
    %v360 = vunpack.c.l.b16 %v216
    %v361 = vunpack.c.l.b16 %v217
    %v362 = vunpack.c.l.b16 %v218
    %v363 = vunpack.c.l.b16 %v219
    %v364 = vunpack.c.l.b16 %v220
    %v365 = vunpack.c.l.b16 %v221
    %v366 = vunpack.c.l.b16 %v222
    %v367 = vunpack.c.l.b16 %v223
    %v368 = vunpack.c.l.b16 %v224
    %v369 = vunpack.c.l.b16 %v225
    %v370 = vunpack.c.l.b16 %v226
    %v371 = vunpack.c.l.b16 %v227
    %v372 = vunpack.c.l.b16 %v228
    %v373 = vunpack.c.l.b16 %v229
    %v374 = vpack.c.b16 %v311, %v310
    %v375 = vpack.c.b16 %v313, %v312
    %v376 = vpack.c.b16 %v315, %v314
    %v377 = vpack.c.b16 %v317, %v316
    %v378 = vpack.c.b16 %v319, %v318
    %v379 = vpack.c.b16 %v321, %v320
    %v380 = vpack.c.b16 %v323, %v322
    %v381 = vpack.c.b16 %v325, %v324
    %v382 = vpack.c.b16 %v327, %v326
    %v383 = vpack.c.b16 %v329, %v328
    %v384 = vpack.c.b16 %v331, %v330
    %v385 = vpack.c.b16 %v333, %v332
    %v386 = vpack.c.b16 %v335, %v334
    %v387 = vpack.c.b16 %v337, %v336
    %v388 = vpack.c.b16 %v339, %v338
    %v389 = vpack.c.b16 %v341, %v340
    %v390 = vpack.c.b16 %v343, %v342
    %v391 = vpack.c.b16 %v345, %v344
    %v392 = vpack.c.b16 %v347, %v346
    %v393 = vpack.c.b16 %v349, %v348
    %v394 = vpack.c.b16 %v351, %v350
    %v395 = vpack.c.b16 %v353, %v352
    %v396 = vpack.c.b16 %v355, %v354
    %v397 = vpack.c.b16 %v357, %v356
    %v398 = vpack.c.b16 %v359, %v358
    %v399 = vpack.c.b16 %v361, %v360
    %v400 = vpack.c.b16 %v363, %v362
    %v401 = vpack.c.b16 %v365, %v364
    %v402 = vpack.c.b16 %v367, %v366
    %v403 = vpack.c.b16 %v369, %v368
    %v404 = vpack.c.b16 %v371, %v370
    %v405 = vpack.c.b16 %v373, %v372
    %v454 = vunpack.c.l.b16 %v230
    %v455 = vunpack.c.l.b16 %v231
    %v456 = vunpack.c.l.b16 %v232
    %v457 = vunpack.c.l.b16 %v233
    %v458 = vunpack.c.l.b16 %v234
    %v459 = vunpack.c.l.b16 %v235
    %v460 = vunpack.c.l.b16 %v236
    %v461 = vunpack.c.l.b16 %v237
    %v462 = vunpack.c.l.b16 %v238
    %v463 = vunpack.c.l.b16 %v239
    %v464 = vunpack.c.l.b16 %v240
    %v465 = vunpack.c.l.b16 %v241
    %v466 = vunpack.c.l.b16 %v242
    %v467 = vunpack.c.l.b16 %v243
    %v468 = vunpack.c.l.b16 %v244
    %v469 = vunpack.c.l.b16 %v245
    %v470 = vpack.c.b16 %v455, %v454
    %v471 = vpack.c.b16 %v457, %v456
    %v472 = vpack.c.b16 %v459, %v458
    %v473 = vpack.c.b16 %v461, %v460
    %v474 = vpack.c.b16 %v463, %v462
    %v475 = vpack.c.b16 %v465, %v464
    %v476 = vpack.c.b16 %v467, %v466
    %v477 = vpack.c.b16 %v469, %v468
    %486 = vmatpush.bf16.msra.mxu0 %v477
    %487 = vmatpush.bf16.msra.mxu0 %v476
    %488 = vmatpush.bf16.msra.mxu0 %v475
    %489 = vmatpush.bf16.msra.mxu0 %v474
    %490 = vmatpush.bf16.msra.mxu0 %v473
    %491 = vmatpush.bf16.msra.mxu0 %v472
    %492 = vmatpush.bf16.msra.mxu0 %v471
    %493 = vmatpush.bf16.msra.mxu0 %v470
    %494 = vmatmul.bf16.gmra.mxu0 %v374
    %v495 = vpop.f32.mrf.mxu0
    %v496 = vadd.f32 0.0, %v495
    %v497 = vpop.f32.mrf.mxu0
    %v498 = vadd.f32 0.0, %v497
    %499 = vmatmul.bf16.gmra.mxu0 %v375
    %v500 = vpop.f32.mrf.mxu0
    %v501 = vadd.f32 0.0, %v500
    %v502 = vpop.f32.mrf.mxu0
    %v503 = vadd.f32 0.0, %v502
    %504 = vmatmul.bf16.gmra.mxu0 %v376
    %v505 = vpop.f32.mrf.mxu0
    %v506 = vadd.f32 0.0, %v505
    %v507 = vpop.f32.mrf.mxu0
    %v508 = vadd.f32 0.0, %v507
    %509 = vmatmul.bf16.gmra.mxu0 %v377
    %v510 = vpop.f32.mrf.mxu0
    %v511 = vadd.f32 0.0, %v510
    %v512 = vpop.f32.mrf.mxu0
    %v513 = vadd.f32 0.0, %v512
    %514 = vmatmul.bf16.gmra.mxu0 %v378
    %v515 = vpop.f32.mrf.mxu0
    %v516 = vadd.f32 0.0, %v515
    %v517 = vpop.f32.mrf.mxu0
    %v518 = vadd.f32 0.0, %v517
    %519 = vmatmul.bf16.gmra.mxu0 %v379
    %v520 = vpop.f32.mrf.mxu0
    %v521 = vadd.f32 0.0, %v520
    %v522 = vpop.f32.mrf.mxu0
    %v523 = vadd.f32 0.0, %v522
    %524 = vmatmul.bf16.gmra.mxu0 %v380
    %v525 = vpop.f32.mrf.mxu0
    %v526 = vadd.f32 0.0, %v525
    %v527 = vpop.f32.mrf.mxu0
    %v528 = vadd.f32 0.0, %v527
    %529 = vmatmul.bf16.gmra.mxu0 %v381
    %v530 = vpop.f32.mrf.mxu0
    %v531 = vadd.f32 0.0, %v530
    %v532 = vpop.f32.mrf.mxu0
    %v533 = vadd.f32 0.0, %v532
    %534 = vmatmul.bf16.gmra.mxu0 %v382
    %v535 = vpop.f32.mrf.mxu0
    %v536 = vadd.f32 0.0, %v535
    %v537 = vpop.f32.mrf.mxu0
    %v538 = vadd.f32 0.0, %v537
    %539 = vmatmul.bf16.gmra.mxu0 %v383
    %v540 = vpop.f32.mrf.mxu0
    %v541 = vadd.f32 0.0, %v540
    %v542 = vpop.f32.mrf.mxu0
    %v543 = vadd.f32 0.0, %v542
    %544 = vmatmul.bf16.gmra.mxu0 %v384
    %v545 = vpop.f32.mrf.mxu0
    %v546 = vadd.f32 0.0, %v545
    %v547 = vpop.f32.mrf.mxu0
    %v548 = vadd.f32 0.0, %v547
    %549 = vmatmul.bf16.gmra.mxu0 %v385
    %v550 = vpop.f32.mrf.mxu0
    %v551 = vadd.f32 0.0, %v550
    %v552 = vpop.f32.mrf.mxu0
    %v553 = vadd.f32 0.0, %v552
    %554 = vmatmul.bf16.gmra.mxu0 %v386
    %v555 = vpop.f32.mrf.mxu0
    %v556 = vadd.f32 0.0, %v555
    %v557 = vpop.f32.mrf.mxu0
    %v558 = vadd.f32 0.0, %v557
    %559 = vmatmul.bf16.gmra.mxu0 %v387
    %v560 = vpop.f32.mrf.mxu0
    %v561 = vadd.f32 0.0, %v560
    %v562 = vpop.f32.mrf.mxu0
    %v563 = vadd.f32 0.0, %v562
    %564 = vmatmul.bf16.gmra.mxu0 %v388
    %v565 = vpop.f32.mrf.mxu0
    %v566 = vadd.f32 0.0, %v565
    %v567 = vpop.f32.mrf.mxu0
    %v568 = vadd.f32 0.0, %v567
    %569 = vmatmul.bf16.gmra.mxu0 %v389
    %v570 = vpop.f32.mrf.mxu0
    %v571 = vadd.f32 0.0, %v570
    %v572 = vpop.f32.mrf.mxu0
    %v573 = vadd.f32 0.0, %v572
    %574 = vmatmul.bf16.gmra.mxu0 %v390
    %v575 = vpop.f32.mrf.mxu0
    %v576 = vadd.f32 0.0, %v575
    %v577 = vpop.f32.mrf.mxu0
    %v578 = vadd.f32 0.0, %v577
    %579 = vmatmul.bf16.gmra.mxu0 %v391
    %v580 = vpop.f32.mrf.mxu0
    %v581 = vadd.f32 0.0, %v580
    %v582 = vpop.f32.mrf.mxu0
    %v583 = vadd.f32 0.0, %v582
    %584 = vmatmul.bf16.gmra.mxu0 %v392
    %v585 = vpop.f32.mrf.mxu0
    %v586 = vadd.f32 0.0, %v585
    %v587 = vpop.f32.mrf.mxu0
    %v588 = vadd.f32 0.0, %v587
    %589 = vmatmul.bf16.gmra.mxu0 %v393
    %v590 = vpop.f32.mrf.mxu0
    %v591 = vadd.f32 0.0, %v590
    %v592 = vpop.f32.mrf.mxu0
    %v593 = vadd.f32 0.0, %v592
    %594 = vmatmul.bf16.gmra.mxu0 %v394
    %v595 = vpop.f32.mrf.mxu0
    %v596 = vadd.f32 0.0, %v595
    %v597 = vpop.f32.mrf.mxu0
    %v598 = vadd.f32 0.0, %v597
    %599 = vmatmul.bf16.gmra.mxu0 %v395
    %v600 = vpop.f32.mrf.mxu0
    %v601 = vadd.f32 0.0, %v600
    %v602 = vpop.f32.mrf.mxu0
    %v603 = vadd.f32 0.0, %v602
    %604 = vmatmul.bf16.gmra.mxu0 %v396
    %v605 = vpop.f32.mrf.mxu0
    %v606 = vadd.f32 0.0, %v605
    %v607 = vpop.f32.mrf.mxu0
    %v608 = vadd.f32 0.0, %v607
    %609 = vmatmul.bf16.gmra.mxu0 %v397
    %v610 = vpop.f32.mrf.mxu0
    %v611 = vadd.f32 0.0, %v610
    %v612 = vpop.f32.mrf.mxu0
    %v613 = vadd.f32 0.0, %v612
    %614 = vmatmul.bf16.gmra.mxu0 %v398
    %v615 = vpop.f32.mrf.mxu0
    %v616 = vadd.f32 0.0, %v615
    %v617 = vpop.f32.mrf.mxu0
    %v618 = vadd.f32 0.0, %v617
    %619 = vmatmul.bf16.gmra.mxu0 %v399
    %v620 = vpop.f32.mrf.mxu0
    %v621 = vadd.f32 0.0, %v620
    %v622 = vpop.f32.mrf.mxu0
    %v623 = vadd.f32 0.0, %v622
    %624 = vmatmul.bf16.gmra.mxu0 %v400
    %v625 = vpop.f32.mrf.mxu0
    %v626 = vadd.f32 0.0, %v625
    %v627 = vpop.f32.mrf.mxu0
    %v628 = vadd.f32 0.0, %v627
    %629 = vmatmul.bf16.gmra.mxu0 %v401
    %v630 = vpop.f32.mrf.mxu0
    %v631 = vadd.f32 0.0, %v630
    %v632 = vpop.f32.mrf.mxu0
    %v633 = vadd.f32 0.0, %v632
    %634 = vmatmul.bf16.gmra.mxu0 %v402
    %v635 = vpop.f32.mrf.mxu0
    %v636 = vadd.f32 0.0, %v635
    %v637 = vpop.f32.mrf.mxu0
    %v638 = vadd.f32 0.0, %v637
    %639 = vmatmul.bf16.gmra.mxu0 %v403
    %v640 = vpop.f32.mrf.mxu0
    %v641 = vadd.f32 0.0, %v640
    %v642 = vpop.f32.mrf.mxu0
    %v643 = vadd.f32 0.0, %v642
    %644 = vmatmul.bf16.gmra.mxu0 %v404
    %v645 = vpop.f32.mrf.mxu0
    %v646 = vadd.f32 0.0, %v645
    %v647 = vpop.f32.mrf.mxu0
    %v648 = vadd.f32 0.0, %v647
    %649 = vmatmul.bf16.gmra.mxu0 %v405
    %v650 = vpop.f32.mrf.mxu0
    %v651 = vadd.f32 0.0, %v650
    %v652 = vpop.f32.mrf.mxu0
    %v653 = vadd.f32 0.0, %v652
    %654 = vdwg.mxu0
    %v655 = vadd.f32 %v102, %v496
    %v656 = vadd.f32 %v103, %v498
    %v657 = vadd.f32 %v104, %v501
    %v658 = vadd.f32 %v105, %v503
    %v659 = vadd.f32 %v106, %v506
    %v660 = vadd.f32 %v107, %v508
    %v661 = vadd.f32 %v108, %v511
    %v662 = vadd.f32 %v109, %v513
    %v663 = vadd.f32 %v110, %v516
    %v664 = vadd.f32 %v111, %v518
    %v665 = vadd.f32 %v112, %v521
    %v666 = vadd.f32 %v113, %v523
    %v667 = vadd.f32 %v114, %v526
    %v668 = vadd.f32 %v115, %v528
    %v669 = vadd.f32 %v116, %v531
    %v670 = vadd.f32 %v117, %v533
    %v671 = vadd.f32 %v118, %v536
    %v672 = vadd.f32 %v119, %v538
    %v673 = vadd.f32 %v120, %v541
    %v674 = vadd.f32 %v121, %v543
    %v675 = vadd.f32 %v122, %v546
    %v676 = vadd.f32 %v123, %v548
    %v677 = vadd.f32 %v124, %v551
    %v678 = vadd.f32 %v125, %v553
    %v679 = vadd.f32 %v126, %v556
    %v680 = vadd.f32 %v127, %v558
    %v681 = vadd.f32 %v128, %v561
    %v682 = vadd.f32 %v129, %v563
    %v683 = vadd.f32 %v130, %v566
    %v684 = vadd.f32 %v131, %v568
    %v685 = vadd.f32 %v132, %v571
    %v686 = vadd.f32 %v133, %v573
    %v687 = vadd.f32 %v134, %v576
    %v688 = vadd.f32 %v135, %v578
    %v689 = vadd.f32 %v136, %v581
    %v690 = vadd.f32 %v137, %v583
    %v691 = vadd.f32 %v138, %v586
    %v692 = vadd.f32 %v139, %v588
    %v693 = vadd.f32 %v140, %v591
    %v694 = vadd.f32 %v141, %v593
    %v695 = vadd.f32 %v142, %v596
    %v696 = vadd.f32 %v143, %v598
    %v697 = vadd.f32 %v144, %v601
    %v698 = vadd.f32 %v145, %v603
    %v699 = vadd.f32 %v146, %v606
    %v700 = vadd.f32 %v147, %v608
    %v701 = vadd.f32 %v148, %v611
    %v702 = vadd.f32 %v149, %v613
    %v703 = vadd.f32 %v150, %v616
    %v704 = vadd.f32 %v151, %v618
    %v705 = vadd.f32 %v152, %v621
    %v706 = vadd.f32 %v153, %v623
    %v707 = vadd.f32 %v154, %v626
    %v708 = vadd.f32 %v155, %v628
    %v709 = vadd.f32 %v156, %v631
    %v710 = vadd.f32 %v157, %v633
    %v711 = vadd.f32 %v158, %v636
    %v712 = vadd.f32 %v159, %v638
    %v713 = vadd.f32 %v160, %v641
    %v714 = vadd.f32 %v161, %v643
    %v715 = vadd.f32 %v162, %v646
    %v716 = vadd.f32 %v163, %v648
    %v717 = vadd.f32 %v164, %v651
    %v718 = vadd.f32 %v165, %v653
    %vm719 = vcmask 523264
    %720 = vst.msk [vmem:[#allocation2] sm:$0xff] %vm719, %v655
    %721 = vst.msk [vmem:[#allocation2 + $0x8] sm:$0xff] %vm719, %v656
    %722 = vst.msk [vmem:[#allocation2 + $0x10] sm:$0xff] %vm719, %v657
    %723 = vst.msk [vmem:[#allocation2 + $0x18] sm:$0xff] %vm719, %v658
    %724 = vst.msk [vmem:[#allocation2 + $0x20] sm:$0xff] %vm719, %v659
    %725 = vst.msk [vmem:[#allocation2 + $0x28] sm:$0xff] %vm719, %v660
    %726 = vst.msk [vmem:[#allocation2 + $0x30] sm:$0xff] %vm719, %v661
    %727 = vst.msk [vmem:[#allocation2 + $0x38] sm:$0xff] %vm719, %v662
    %728 = vst.msk [vmem:[#allocation2 + $0x40] sm:$0xff] %vm719, %v663
    %729 = vst.msk [vmem:[#allocation2 + $0x48] sm:$0xff] %vm719, %v664
    %730 = vst.msk [vmem:[#allocation2 + $0x50] sm:$0xff] %vm719, %v665
    %731 = vst.msk [vmem:[#allocation2 + $0x58] sm:$0xff] %vm719, %v666
    %732 = vst.msk [vmem:[#allocation2 + $0x60] sm:$0xff] %vm719, %v667
    %733 = vst.msk [vmem:[#allocation2 + $0x68] sm:$0xff] %vm719, %v668
    %734 = vst.msk [vmem:[#allocation2 + $0x70] sm:$0xff] %vm719, %v669
    %735 = vst.msk [vmem:[#allocation2 + $0x78] sm:$0xff] %vm719, %v670
    %736 = vst.msk [vmem:[#allocation2 + $0x80] sm:$0xff] %vm719, %v671
    %737 = vst.msk [vmem:[#allocation2 + $0x88] sm:$0xff] %vm719, %v672
    %738 = vst.msk [vmem:[#allocation2 + $0x90] sm:$0xff] %vm719, %v673
    %739 = vst.msk [vmem:[#allocation2 + $0x98] sm:$0xff] %vm719, %v674
    %740 = vst.msk [vmem:[#allocation2 + $0xa0] sm:$0xff] %vm719, %v675
    %741 = vst.msk [vmem:[#allocation2 + $0xa8] sm:$0xff] %vm719, %v676
    %742 = vst.msk [vmem:[#allocation2 + $0xb0] sm:$0xff] %vm719, %v677
    %743 = vst.msk [vmem:[#allocation2 + $0xb8] sm:$0xff] %vm719, %v678
    %744 = vst.msk [vmem:[#allocation2 + $0xc0] sm:$0xff] %vm719, %v679
    %745 = vst.msk [vmem:[#allocation2 + $0xc8] sm:$0xff] %vm719, %v680
    %746 = vst.msk [vmem:[#allocation2 + $0xd0] sm:$0xff] %vm719, %v681
    %747 = vst.msk [vmem:[#allocation2 + $0xd8] sm:$0xff] %vm719, %v682
    %748 = vst.msk [vmem:[#allocation2 + $0xe0] sm:$0xff] %vm719, %v683
    %749 = vst.msk [vmem:[#allocation2 + $0xe8] sm:$0xff] %vm719, %v684
    %750 = vst.msk [vmem:[#allocation2 + $0xf0] sm:$0xff] %vm719, %v685
    %751 = vst.msk [vmem:[#allocation2 + $0xf8] sm:$0xff] %vm719, %v686
    %752 = vst.msk [vmem:[#allocation2 + $0x100] sm:$0xff] %vm719, %v687
    %753 = vst.msk [vmem:[#allocation2 + $0x108] sm:$0xff] %vm719, %v688
    %754 = vst.msk [vmem:[#allocation2 + $0x110] sm:$0xff] %vm719, %v689
    %755 = vst.msk [vmem:[#allocation2 + $0x118] sm:$0xff] %vm719, %v690
    %756 = vst.msk [vmem:[#allocation2 + $0x120] sm:$0xff] %vm719, %v691
    %757 = vst.msk [vmem:[#allocation2 + $0x128] sm:$0xff] %vm719, %v692
    %758 = vst.msk [vmem:[#allocation2 + $0x130] sm:$0xff] %vm719, %v693
    %759 = vst.msk [vmem:[#allocation2 + $0x138] sm:$0xff] %vm719, %v694
    %760 = vst.msk [vmem:[#allocation2 + $0x140] sm:$0xff] %vm719, %v695
    %761 = vst.msk [vmem:[#allocation2 + $0x148] sm:$0xff] %vm719, %v696
    %762 = vst.msk [vmem:[#allocation2 + $0x150] sm:$0xff] %vm719, %v697
    %763 = vst.msk [vmem:[#allocation2 + $0x158] sm:$0xff] %vm719, %v698
    %764 = vst.msk [vmem:[#allocation2 + $0x160] sm:$0xff] %vm719, %v699
    %765 = vst.msk [vmem:[#allocation2 + $0x168] sm:$0xff] %vm719, %v700
    %766 = vst.msk [vmem:[#allocation2 + $0x170] sm:$0xff] %vm719, %v701
    %767 = vst.msk [vmem:[#allocation2 + $0x178] sm:$0xff] %vm719, %v702
    %768 = vst.msk [vmem:[#allocation2 + $0x180] sm:$0xff] %vm719, %v703
    %769 = vst.msk [vmem:[#allocation2 + $0x188] sm:$0xff] %vm719, %v704
    %770 = vst.msk [vmem:[#allocation2 + $0x190] sm:$0xff] %vm719, %v705
    %771 = vst.msk [vmem:[#allocation2 + $0x198] sm:$0xff] %vm719, %v706
    %772 = vst.msk [vmem:[#allocation2 + $0x1a0] sm:$0xff] %vm719, %v707
    %773 = vst.msk [vmem:[#allocation2 + $0x1a8] sm:$0xff] %vm719, %v708
    %774 = vst.msk [vmem:[#allocation2 + $0x1b0] sm:$0xff] %vm719, %v709
    %775 = vst.msk [vmem:[#allocation2 + $0x1b8] sm:$0xff] %vm719, %v710
    %776 = vst.msk [vmem:[#allocation2 + $0x1c0] sm:$0xff] %vm719, %v711
    %777 = vst.msk [vmem:[#allocation2 + $0x1c8] sm:$0xff] %vm719, %v712
    %778 = vst.msk [vmem:[#allocation2 + $0x1d0] sm:$0xff] %vm719, %v713
    %779 = vst.msk [vmem:[#allocation2 + $0x1d8] sm:$0xff] %vm719, %v714
    %780 = vst.msk [vmem:[#allocation2 + $0x1e0] sm:$0xff] %vm719, %v715
    %781 = vst.msk [vmem:[#allocation2 + $0x1e8] sm:$0xff] %vm719, %v716
    %782 = vst.msk [vmem:[#allocation2 + $0x1f0] sm:$0xff] %vm719, %v717
    %783 = vst.msk [vmem:[#allocation2 + $0x1f8] sm:$0xff] %vm719, %v718
    // Predicated region
    $region26: #{tpu_custom_call.1} parent=1 // pred_check
      %p784 = pneg %p33
    $region27: #{tpu_custom_call.1} parent=1 // pred_check_branch
      %786 = sbr.rel (%p784) target = $region29
    $region28: #{tpu_custom_call.1} parent=1 // pred_region
      %v787 = vld [vmem:[#allocation2] sm:$0xff]
      %v788 = vld [vmem:[#allocation2 + $0x8] sm:$0xff]
      %v789 = vld [vmem:[#allocation2 + $0x10] sm:$0xff]
      %v790 = vld [vmem:[#allocation2 + $0x18] sm:$0xff]
      %v791 = vld [vmem:[#allocation2 + $0x20] sm:$0xff]
      %v792 = vld [vmem:[#allocation2 + $0x28] sm:$0xff]
      %v793 = vld [vmem:[#allocation2 + $0x30] sm:$0xff]
      %v794 = vld [vmem:[#allocation2 + $0x38] sm:$0xff]
      %v795 = vld [vmem:[#allocation2 + $0x40] sm:$0xff]
      %v796 = vld [vmem:[#allocation2 + $0x48] sm:$0xff]
      %v797 = vld [vmem:[#allocation2 + $0x50] sm:$0xff]
      %v798 = vld [vmem:[#allocation2 + $0x58] sm:$0xff]
      %v799 = vld [vmem:[#allocation2 + $0x60] sm:$0xff]
      %v800 = vld [vmem:[#allocation2 + $0x68] sm:$0xff]
      %v801 = vld [vmem:[#allocation2 + $0x70] sm:$0xff]
      %v802 = vld [vmem:[#allocation2 + $0x78] sm:$0xff]
      %v803 = vld [vmem:[#allocation2 + $0x80] sm:$0xff]
      %v804 = vld [vmem:[#allocation2 + $0x88] sm:$0xff]
      %v805 = vld [vmem:[#allocation2 + $0x90] sm:$0xff]
      %v806 = vld [vmem:[#allocation2 + $0x98] sm:$0xff]
      %v807 = vld [vmem:[#allocation2 + $0xa0] sm:$0xff]
      %v808 = vld [vmem:[#allocation2 + $0xa8] sm:$0xff]
      %v809 = vld [vmem:[#allocation2 + $0xb0] sm:$0xff]
      %v810 = vld [vmem:[#allocation2 + $0xb8] sm:$0xff]
      %v811 = vld [vmem:[#allocation2 + $0xc0] sm:$0xff]
      %v812 = vld [vmem:[#allocation2 + $0xc8] sm:$0xff]
      %v813 = vld [vmem:[#allocation2 + $0xd0] sm:$0xff]
      %v814 = vld [vmem:[#allocation2 + $0xd8] sm:$0xff]
      %v815 = vld [vmem:[#allocation2 + $0xe0] sm:$0xff]
      %v816 = vld [vmem:[#allocation2 + $0xe8] sm:$0xff]
      %v817 = vld [vmem:[#allocation2 + $0xf0] sm:$0xff]
      %v818 = vld [vmem:[#allocation2 + $0xf8] sm:$0xff]
      %v819 = vld [vmem:[#allocation2 + $0x100] sm:$0xff]
      %v820 = vld [vmem:[#allocation2 + $0x108] sm:$0xff]
      %v821 = vld [vmem:[#allocation2 + $0x110] sm:$0xff]
      %v822 = vld [vmem:[#allocation2 + $0x118] sm:$0xff]
      %v823 = vld [vmem:[#allocation2 + $0x120] sm:$0xff]
      %v824 = vld [vmem:[#allocation2 + $0x128] sm:$0xff]
      %v825 = vld [vmem:[#allocation2 + $0x130] sm:$0xff]
      %v826 = vld [vmem:[#allocation2 + $0x138] sm:$0xff]
      %v827 = vld [vmem:[#allocation2 + $0x140] sm:$0xff]
      %v828 = vld [vmem:[#allocation2 + $0x148] sm:$0xff]
      %v829 = vld [vmem:[#allocation2 + $0x150] sm:$0xff]
      %v830 = vld [vmem:[#allocation2 + $0x158] sm:$0xff]
      %v831 = vld [vmem:[#allocation2 + $0x160] sm:$0xff]
      %v832 = vld [vmem:[#allocation2 + $0x168] sm:$0xff]
      %v833 = vld [vmem:[#allocation2 + $0x170] sm:$0xff]
      %v834 = vld [vmem:[#allocation2 + $0x178] sm:$0xff]
      %v835 = vld [vmem:[#allocation2 + $0x180] sm:$0xff]
      %v836 = vld [vmem:[#allocation2 + $0x188] sm:$0xff]
      %v837 = vld [vmem:[#allocation2 + $0x190] sm:$0xff]
      %v838 = vld [vmem:[#allocation2 + $0x198] sm:$0xff]
      %v839 = vld [vmem:[#allocation2 + $0x1a0] sm:$0xff]
      %v840 = vld [vmem:[#allocation2 + $0x1a8] sm:$0xff]
      %v841 = vld [vmem:[#allocation2 + $0x1b0] sm:$0xff]
      %v842 = vld [vmem:[#allocation2 + $0x1b8] sm:$0xff]
      %v843 = vld [vmem:[#allocation2 + $0x1c0] sm:$0xff]
      %v844 = vld [vmem:[#allocation2 + $0x1c8] sm:$0xff]
      %v845 = vld [vmem:[#allocation2 + $0x1d0] sm:$0xff]
      %v846 = vld [vmem:[#allocation2 + $0x1d8] sm:$0xff]
      %v847 = vld [vmem:[#allocation2 + $0x1e0] sm:$0xff]
      %v848 = vld [vmem:[#allocation2 + $0x1e8] sm:$0xff]
      %v849 = vld [vmem:[#allocation2 + $0x1f0] sm:$0xff]
      %v850 = vld [vmem:[#allocation2 + $0x1f8] sm:$0xff]
      %v851 = vsel %vm719, %v787, 0.0
      %v852 = vsel %vm719, %v788, 0.0
      %v853 = vadd.f32 %v851, %v852
      %v854 = vsel %vm719, %v789, 0.0
      %v855 = vadd.f32 %v853, %v854
      %v856 = vsel %vm719, %v790, 0.0
      %v857 = vadd.f32 %v855, %v856
      %v858 = vsel %vm719, %v791, 0.0
      %v859 = vadd.f32 %v857, %v858
      %v860 = vsel %vm719, %v792, 0.0
      %v861 = vadd.f32 %v859, %v860
      %v862 = vsel %vm719, %v793, 0.0
      %v863 = vadd.f32 %v861, %v862
      %v864 = vsel %vm719, %v794, 0.0
      %v865 = vadd.f32 %v863, %v864
      %v866 = vsel %vm719, %v795, 0.0
      %v867 = vadd.f32 %v865, %v866
      %v868 = vsel %vm719, %v796, 0.0
      %v869 = vadd.f32 %v867, %v868
      %v870 = vsel %vm719, %v797, 0.0
      %v871 = vadd.f32 %v869, %v870
      %v872 = vsel %vm719, %v798, 0.0
      %v873 = vadd.f32 %v871, %v872
      %v874 = vsel %vm719, %v799, 0.0
      %v875 = vadd.f32 %v873, %v874
      %v876 = vsel %vm719, %v800, 0.0
      %v877 = vadd.f32 %v875, %v876
      %v878 = vsel %vm719, %v801, 0.0
      %v879 = vadd.f32 %v877, %v878
      %v880 = vsel %vm719, %v802, 0.0
      %v881 = vadd.f32 %v879, %v880
      %v882 = vsel %vm719, %v803, 0.0
      %v883 = vadd.f32 %v881, %v882
      %v884 = vsel %vm719, %v804, 0.0
      %v885 = vadd.f32 %v883, %v884
      %v886 = vsel %vm719, %v805, 0.0
      %v887 = vadd.f32 %v885, %v886
      %v888 = vsel %vm719, %v806, 0.0
      %v889 = vadd.f32 %v887, %v888
      %v890 = vsel %vm719, %v807, 0.0
      %v891 = vadd.f32 %v889, %v890
      %v892 = vsel %vm719, %v808, 0.0
      %v893 = vadd.f32 %v891, %v892
      %v894 = vsel %vm719, %v809, 0.0
      %v895 = vadd.f32 %v893, %v894
      %v896 = vsel %vm719, %v810, 0.0
      %v897 = vadd.f32 %v895, %v896
      %v898 = vsel %vm719, %v811, 0.0
      %v899 = vadd.f32 %v897, %v898
      %v900 = vsel %vm719, %v812, 0.0
      %v901 = vadd.f32 %v899, %v900
      %v902 = vsel %vm719, %v813, 0.0
      %v903 = vadd.f32 %v901, %v902
      %v904 = vsel %vm719, %v814, 0.0
      %v905 = vadd.f32 %v903, %v904
      %v906 = vsel %vm719, %v815, 0.0
      %v907 = vadd.f32 %v905, %v906
      %v908 = vsel %vm719, %v816, 0.0
      %v909 = vadd.f32 %v907, %v908
      %v910 = vsel %vm719, %v817, 0.0
      %v911 = vadd.f32 %v909, %v910
      %v912 = vsel %vm719, %v818, 0.0
      %v913 = vadd.f32 %v911, %v912
      %v914 = vsel %vm719, %v819, 0.0
      %v915 = vadd.f32 %v913, %v914
      %v916 = vsel %vm719, %v820, 0.0
      %v917 = vadd.f32 %v915, %v916
      %v918 = vsel %vm719, %v821, 0.0
      %v919 = vadd.f32 %v917, %v918
      %v920 = vsel %vm719, %v822, 0.0
      %v921 = vadd.f32 %v919, %v920
      %v922 = vsel %vm719, %v823, 0.0
      %v923 = vadd.f32 %v921, %v922
      %v924 = vsel %vm719, %v824, 0.0
      %v925 = vadd.f32 %v923, %v924
      %v926 = vsel %vm719, %v825, 0.0
      %v927 = vadd.f32 %v925, %v926
      %v928 = vsel %vm719, %v826, 0.0
      %v929 = vadd.f32 %v927, %v928
      %v930 = vsel %vm719, %v827, 0.0
      %v931 = vadd.f32 %v929, %v930
      %v932 = vsel %vm719, %v828, 0.0
      %v933 = vadd.f32 %v931, %v932
      %v934 = vsel %vm719, %v829, 0.0
      %v935 = vadd.f32 %v933, %v934
      %v936 = vsel %vm719, %v830, 0.0
      %v937 = vadd.f32 %v935, %v936
      %v938 = vsel %vm719, %v831, 0.0
      %v939 = vadd.f32 %v937, %v938
      %v940 = vsel %vm719, %v832, 0.0
      %v941 = vadd.f32 %v939, %v940
      %v942 = vsel %vm719, %v833, 0.0
      %v943 = vadd.f32 %v941, %v942
      %v944 = vsel %vm719, %v834, 0.0
      %v945 = vadd.f32 %v943, %v944
      %v946 = vsel %vm719, %v835, 0.0
      %v947 = vadd.f32 %v945, %v946
      %v948 = vsel %vm719, %v836, 0.0
      %v949 = vadd.f32 %v947, %v948
      %v950 = vsel %vm719, %v837, 0.0
      %v951 = vadd.f32 %v949, %v950
      %v952 = vsel %vm719, %v838, 0.0
      %v953 = vadd.f32 %v951, %v952
      %v954 = vsel %vm719, %v839, 0.0
      %v955 = vadd.f32 %v953, %v954
      %v956 = vsel %vm719, %v840, 0.0
      %v957 = vadd.f32 %v955, %v956
      %v958 = vsel %vm719, %v841, 0.0
      %v959 = vadd.f32 %v957, %v958
      %v960 = vsel %vm719, %v842, 0.0
      %v961 = vadd.f32 %v959, %v960
      %v962 = vsel %vm719, %v843, 0.0
      %v963 = vadd.f32 %v961, %v962
      %v964 = vsel %vm719, %v844, 0.0
      %v965 = vadd.f32 %v963, %v964
      %v966 = vsel %vm719, %v845, 0.0
      %v967 = vadd.f32 %v965, %v966
      %v968 = vsel %vm719, %v846, 0.0
      %v969 = vadd.f32 %v967, %v968
      %v970 = vsel %vm719, %v847, 0.0
      %v971 = vadd.f32 %v969, %v970
      %v972 = vsel %vm719, %v848, 0.0
      %v973 = vadd.f32 %v971, %v972
      %v974 = vsel %vm719, %v849, 0.0
      %v975 = vadd.f32 %v973, %v974
      %v976 = vsel %vm719, %v850, 0.0
      %v977 = vadd.f32 %v975, %v976
      %v978 = vrot.slane %v977, 4
      %v979 = vadd.f32 %v977, %v978
      %v980 = vrot.slane %v979, 2
      %v981 = vadd.f32 %v979, %v980
      %v982 = vrot.slane %v981, 1
      %v983 = vadd.f32 %v981, %v982
      %v984 = vmul.f32 %v983, 0.001953125
      %v985 = vmul.f32 %v787, %v787
      %v986 = vmul.f32 %v788, %v788
      %v987 = vmul.f32 %v789, %v789
      %v988 = vmul.f32 %v790, %v790
      %v989 = vmul.f32 %v791, %v791
      %v990 = vmul.f32 %v792, %v792
      %v991 = vmul.f32 %v793, %v793
      %v992 = vmul.f32 %v794, %v794
      %v993 = vmul.f32 %v795, %v795
      %v994 = vmul.f32 %v796, %v796
      %v995 = vmul.f32 %v797, %v797
      %v996 = vmul.f32 %v798, %v798
      %v997 = vmul.f32 %v799, %v799
      %v998 = vmul.f32 %v800, %v800
      %v999 = vmul.f32 %v801, %v801
      %v1000 = vmul.f32 %v802, %v802
      %v1001 = vmul.f32 %v803, %v803
      %v1002 = vmul.f32 %v804, %v804
      %v1003 = vmul.f32 %v805, %v805
      %v1004 = vmul.f32 %v806, %v806
      %v1005 = vmul.f32 %v807, %v807
      %v1006 = vmul.f32 %v808, %v808
      %v1007 = vmul.f32 %v809, %v809
      %v1008 = vmul.f32 %v810, %v810
      %v1009 = vmul.f32 %v811, %v811
      %v1010 = vmul.f32 %v812, %v812
      %v1011 = vmul.f32 %v813, %v813
      %v1012 = vmul.f32 %v814, %v814
      %v1013 = vmul.f32 %v815, %v815
      %v1014 = vmul.f32 %v816, %v816
      %v1015 = vmul.f32 %v817, %v817
      %v1016 = vmul.f32 %v818, %v818
      %v1017 = vmul.f32 %v819, %v819
      %v1018 = vmul.f32 %v820, %v820
      %v1019 = vmul.f32 %v821, %v821
      %v1020 = vmul.f32 %v822, %v822
      %v1021 = vmul.f32 %v823, %v823
      %v1022 = vmul.f32 %v824, %v824
      %v1023 = vmul.f32 %v825, %v825
      %v1024 = vmul.f32 %v826, %v826
      %v1025 = vmul.f32 %v827, %v827
      %v1026 = vmul.f32 %v828, %v828
      %v1027 = vmul.f32 %v829, %v829
      %v1028 = vmul.f32 %v830, %v830
      %v1029 = vmul.f32 %v831, %v831
      %v1030 = vmul.f32 %v832, %v832
      %v1031 = vmul.f32 %v833, %v833
      %v1032 = vmul.f32 %v834, %v834
      %v1033 = vmul.f32 %v835, %v835
      %v1034 = vmul.f32 %v836, %v836
      %v1035 = vmul.f32 %v837, %v837
      %v1036 = vmul.f32 %v838, %v838
      %v1037 = vmul.f32 %v839, %v839
      %v1038 = vmul.f32 %v840, %v840
      %v1039 = vmul.f32 %v841, %v841
      %v1040 = vmul.f32 %v842, %v842
      %v1041 = vmul.f32 %v843, %v843
      %v1042 = vmul.f32 %v844, %v844
      %v1043 = vmul.f32 %v845, %v845
      %v1044 = vmul.f32 %v846, %v846
      %v1045 = vmul.f32 %v847, %v847
      %v1046 = vmul.f32 %v848, %v848
      %v1047 = vmul.f32 %v849, %v849
      %v1048 = vmul.f32 %v850, %v850
      %v1049 = vsel %vm719, %v985, 0.0
      %v1050 = vsel %vm719, %v986, 0.0
      %v1051 = vadd.f32 %v1049, %v1050
      %v1052 = vsel %vm719, %v987, 0.0
      %v1053 = vadd.f32 %v1051, %v1052
      %v1054 = vsel %vm719, %v988, 0.0
      %v1055 = vadd.f32 %v1053, %v1054
      %v1056 = vsel %vm719, %v989, 0.0
      %v1057 = vadd.f32 %v1055, %v1056
      %v1058 = vsel %vm719, %v990, 0.0
      %v1059 = vadd.f32 %v1057, %v1058
      %v1060 = vsel %vm719, %v991, 0.0
      %v1061 = vadd.f32 %v1059, %v1060
      %v1062 = vsel %vm719, %v992, 0.0
      %v1063 = vadd.f32 %v1061, %v1062
      %v1064 = vsel %vm719, %v993, 0.0
      %v1065 = vadd.f32 %v1063, %v1064
      %v1066 = vsel %vm719, %v994, 0.0
      %v1067 = vadd.f32 %v1065, %v1066
      %v1068 = vsel %vm719, %v995, 0.0
      %v1069 = vadd.f32 %v1067, %v1068
      %v1070 = vsel %vm719, %v996, 0.0
      %v1071 = vadd.f32 %v1069, %v1070
      %v1072 = vsel %vm719, %v997, 0.0
      %v1073 = vadd.f32 %v1071, %v1072
      %v1074 = vsel %vm719, %v998, 0.0
      %v1075 = vadd.f32 %v1073, %v1074
      %v1076 = vsel %vm719, %v999, 0.0
      %v1077 = vadd.f32 %v1075, %v1076
      %v1078 = vsel %vm719, %v1000, 0.0
      %v1079 = vadd.f32 %v1077, %v1078
      %v1080 = vsel %vm719, %v1001, 0.0
      %v1081 = vadd.f32 %v1079, %v1080
      %v1082 = vsel %vm719, %v1002, 0.0
      %v1083 = vadd.f32 %v1081, %v1082
      %v1084 = vsel %vm719, %v1003, 0.0
      %v1085 = vadd.f32 %v1083, %v1084
      %v1086 = vsel %vm719, %v1004, 0.0
      %v1087 = vadd.f32 %v1085, %v1086
      %v1088 = vsel %vm719, %v1005, 0.0
      %v1089 = vadd.f32 %v1087, %v1088
      %v1090 = vsel %vm719, %v1006, 0.0
      %v1091 = vadd.f32 %v1089, %v1090
      %v1092 = vsel %vm719, %v1007, 0.0
      %v1093 = vadd.f32 %v1091, %v1092
      %v1094 = vsel %vm719, %v1008, 0.0
      %v1095 = vadd.f32 %v1093, %v1094
      %v1096 = vsel %vm719, %v1009, 0.0
      %v1097 = vadd.f32 %v1095, %v1096
      %v1098 = vsel %vm719, %v1010, 0.0
      %v1099 = vadd.f32 %v1097, %v1098
      %v1100 = vsel %vm719, %v1011, 0.0
      %v1101 = vadd.f32 %v1099, %v1100
      %v1102 = vsel %vm719, %v1012, 0.0
      %v1103 = vadd.f32 %v1101, %v1102
      %v1104 = vsel %vm719, %v1013, 0.0
      %v1105 = vadd.f32 %v1103, %v1104
      %v1106 = vsel %vm719, %v1014, 0.0
      %v1107 = vadd.f32 %v1105, %v1106
      %v1108 = vsel %vm719, %v1015, 0.0
      %v1109 = vadd.f32 %v1107, %v1108
      %v1110 = vsel %vm719, %v1016, 0.0
      %v1111 = vadd.f32 %v1109, %v1110
      %v1112 = vsel %vm719, %v1017, 0.0
      %v1113 = vadd.f32 %v1111, %v1112
      %v1114 = vsel %vm719, %v1018, 0.0
      %v1115 = vadd.f32 %v1113, %v1114
      %v1116 = vsel %vm719, %v1019, 0.0
      %v1117 = vadd.f32 %v1115, %v1116
      %v1118 = vsel %vm719, %v1020, 0.0
      %v1119 = vadd.f32 %v1117, %v1118
      %v1120 = vsel %vm719, %v1021, 0.0
      %v1121 = vadd.f32 %v1119, %v1120
      %v1122 = vsel %vm719, %v1022, 0.0
      %v1123 = vadd.f32 %v1121, %v1122
      %v1124 = vsel %vm719, %v1023, 0.0
      %v1125 = vadd.f32 %v1123, %v1124
      %v1126 = vsel %vm719, %v1024, 0.0
      %v1127 = vadd.f32 %v1125, %v1126
      %v1128 = vsel %vm719, %v1025, 0.0
      %v1129 = vadd.f32 %v1127, %v1128
      %v1130 = vsel %vm719, %v1026, 0.0
      %v1131 = vadd.f32 %v1129, %v1130
      %v1132 = vsel %vm719, %v1027, 0.0
      %v1133 = vadd.f32 %v1131, %v1132
      %v1134 = vsel %vm719, %v1028, 0.0
      %v1135 = vadd.f32 %v1133, %v1134
      %v1136 = vsel %vm719, %v1029, 0.0
      %v1137 = vadd.f32 %v1135, %v1136
      %v1138 = vsel %vm719, %v1030, 0.0
      %v1139 = vadd.f32 %v1137, %v1138
      %v1140 = vsel %vm719, %v1031, 0.0
      %v1141 = vadd.f32 %v1139, %v1140
      %v1142 = vsel %vm719, %v1032, 0.0
      %v1143 = vadd.f32 %v1141, %v1142
      %v1144 = vsel %vm719, %v1033, 0.0
      %v1145 = vadd.f32 %v1143, %v1144
      %v1146 = vsel %vm719, %v1034, 0.0
      %v1147 = vadd.f32 %v1145, %v1146
      %v1148 = vsel %vm719, %v1035, 0.0
      %v1149 = vadd.f32 %v1147, %v1148
      %v1150 = vsel %vm719, %v1036, 0.0
      %v1151 = vadd.f32 %v1149, %v1150
      %v1152 = vsel %vm719, %v1037, 0.0
      %v1153 = vadd.f32 %v1151, %v1152
      %v1154 = vsel %vm719, %v1038, 0.0
      %v1155 = vadd.f32 %v1153, %v1154
      %v1156 = vsel %vm719, %v1039, 0.0
      %v1157 = vadd.f32 %v1155, %v1156
      %v1158 = vsel %vm719, %v1040, 0.0
      %v1159 = vadd.f32 %v1157, %v1158
      %v1160 = vsel %vm719, %v1041, 0.0
      %v1161 = vadd.f32 %v1159, %v1160
      %v1162 = vsel %vm719, %v1042, 0.0
      %v1163 = vadd.f32 %v1161, %v1162
      %v1164 = vsel %vm719, %v1043, 0.0
      %v1165 = vadd.f32 %v1163, %v1164
      %v1166 = vsel %vm719, %v1044, 0.0
      %v1167 = vadd.f32 %v1165, %v1166
      %v1168 = vsel %vm719, %v1045, 0.0
      %v1169 = vadd.f32 %v1167, %v1168
      %v1170 = vsel %vm719, %v1046, 0.0
      %v1171 = vadd.f32 %v1169, %v1170
      %v1172 = vsel %vm719, %v1047, 0.0
      %v1173 = vadd.f32 %v1171, %v1172
      %v1174 = vsel %vm719, %v1048, 0.0
      %v1175 = vadd.f32 %v1173, %v1174
      %v1176 = vrot.slane %v1175, 4
      %v1177 = vadd.f32 %v1175, %v1176
      %v1178 = vrot.slane %v1177, 2
      %v1179 = vadd.f32 %v1177, %v1178
      %v1180 = vrot.slane %v1179, 1
      %v1181 = vadd.f32 %v1179, %v1180
      %v1182 = vmul.f32 %v1181, 0.001953125
      %v1183 = vmul.f32 %v984, %v984
      %v1184 = vsub.f32 %v1182, %v1183
      %v1185 = vmax.f32 %v1184, 0.0
      %v1186 = vld [vmem:[%s2] sm:$0x1]
      %v1187 = vadd.f32 %v1185, 1e-05
      %v1188 = vrsqrt.pop %v1187
      %v1189 = vmul.f32 %v1188, %v1187
      %v1190 = vmul.f32 %v1189, %v1188
      %v1191 = vmul.f32 0.5, %v1190
      %v1192 = vsub.f32 1.5, %v1191
      %v1193 = vmul.f32 %v1188, %v1192
      %vm1194 = vweird.f32 %v1187
      %vm1195 = vweird.f32 %v1188
      %vm1196 = vmor %vm1194, %vm1195
      %v1197 = vsel %vm1196, %v1188, %v1193
      %v1198 = vmul.f32 %v1186, %v1197
      %v1199 = vld [vmem:[%s3] sm:$0x1]
      %v1200 = vmul.f32 %v984, %v1198
      %v1201 = vsub.f32 %v1199, %v1200
      %v1203 = vperm.slane %v1198, 0
      %v1205 = vmul.f32 %v787, %v1203
      %v1206 = vmul.f32 %v788, %v1203
      %v1207 = vmul.f32 %v789, %v1203
      %v1208 = vmul.f32 %v790, %v1203
      %v1209 = vmul.f32 %v791, %v1203
      %v1210 = vmul.f32 %v792, %v1203
      %v1211 = vmul.f32 %v793, %v1203
      %v1212 = vmul.f32 %v794, %v1203
      %v1213 = vmul.f32 %v795, %v1203
      %v1214 = vmul.f32 %v796, %v1203
      %v1215 = vmul.f32 %v797, %v1203
      %v1216 = vmul.f32 %v798, %v1203
      %v1217 = vmul.f32 %v799, %v1203
      %v1218 = vmul.f32 %v800, %v1203
      %v1219 = vmul.f32 %v801, %v1203
      %v1220 = vmul.f32 %v802, %v1203
      %v1221 = vmul.f32 %v803, %v1203
      %v1222 = vmul.f32 %v804, %v1203
      %v1223 = vmul.f32 %v805, %v1203
      %v1224 = vmul.f32 %v806, %v1203
      %v1225 = vmul.f32 %v807, %v1203
      %v1226 = vmul.f32 %v808, %v1203
      %v1227 = vmul.f32 %v809, %v1203
      %v1228 = vmul.f32 %v810, %v1203
      %v1229 = vmul.f32 %v811, %v1203
      %v1230 = vmul.f32 %v812, %v1203
      %v1231 = vmul.f32 %v813, %v1203
      %v1232 = vmul.f32 %v814, %v1203
      %v1233 = vmul.f32 %v815, %v1203
      %v1234 = vmul.f32 %v816, %v1203
      %v1235 = vmul.f32 %v817, %v1203
      %v1236 = vmul.f32 %v818, %v1203
      %v1237 = vmul.f32 %v819, %v1203
      %v1238 = vmul.f32 %v820, %v1203
      %v1239 = vmul.f32 %v821, %v1203
      %v1240 = vmul.f32 %v822, %v1203
      %v1241 = vmul.f32 %v823, %v1203
      %v1242 = vmul.f32 %v824, %v1203
      %v1243 = vmul.f32 %v825, %v1203
      %v1244 = vmul.f32 %v826, %v1203
      %v1245 = vmul.f32 %v827, %v1203
      %v1246 = vmul.f32 %v828, %v1203
      %v1247 = vmul.f32 %v829, %v1203
      %v1248 = vmul.f32 %v830, %v1203
      %v1249 = vmul.f32 %v831, %v1203
      %v1250 = vmul.f32 %v832, %v1203
      %v1251 = vmul.f32 %v833, %v1203
      %v1252 = vmul.f32 %v834, %v1203
      %v1253 = vmul.f32 %v835, %v1203
      %v1254 = vmul.f32 %v836, %v1203
      %v1255 = vmul.f32 %v837, %v1203
      %v1256 = vmul.f32 %v838, %v1203
      %v1257 = vmul.f32 %v839, %v1203
      %v1258 = vmul.f32 %v840, %v1203
      %v1259 = vmul.f32 %v841, %v1203
      %v1260 = vmul.f32 %v842, %v1203
      %v1261 = vmul.f32 %v843, %v1203
      %v1262 = vmul.f32 %v844, %v1203
      %v1263 = vmul.f32 %v845, %v1203
      %v1264 = vmul.f32 %v846, %v1203
      %v1265 = vmul.f32 %v847, %v1203
      %v1266 = vmul.f32 %v848, %v1203
      %v1267 = vmul.f32 %v849, %v1203
      %v1268 = vmul.f32 %v850, %v1203
      %v1270 = vperm.slane %v1201, 0
      %v1272 = vadd.f32 %v1205, %v1270
      %v1273 = vadd.f32 %v1206, %v1270
      %v1274 = vadd.f32 %v1207, %v1270
      %v1275 = vadd.f32 %v1208, %v1270
      %v1276 = vadd.f32 %v1209, %v1270
      %v1277 = vadd.f32 %v1210, %v1270
      %v1278 = vadd.f32 %v1211, %v1270
      %v1279 = vadd.f32 %v1212, %v1270
      %v1280 = vadd.f32 %v1213, %v1270
      %v1281 = vadd.f32 %v1214, %v1270
      %v1282 = vadd.f32 %v1215, %v1270
      %v1283 = vadd.f32 %v1216, %v1270
      %v1284 = vadd.f32 %v1217, %v1270
      %v1285 = vadd.f32 %v1218, %v1270
      %v1286 = vadd.f32 %v1219, %v1270
      %v1287 = vadd.f32 %v1220, %v1270
      %v1288 = vadd.f32 %v1221, %v1270
      %v1289 = vadd.f32 %v1222, %v1270
      %v1290 = vadd.f32 %v1223, %v1270
      %v1291 = vadd.f32 %v1224, %v1270
      %v1292 = vadd.f32 %v1225, %v1270
      %v1293 = vadd.f32 %v1226, %v1270
      %v1294 = vadd.f32 %v1227, %v1270
      %v1295 = vadd.f32 %v1228, %v1270
      %v1296 = vadd.f32 %v1229, %v1270
      %v1297 = vadd.f32 %v1230, %v1270
      %v1298 = vadd.f32 %v1231, %v1270
      %v1299 = vadd.f32 %v1232, %v1270
      %v1300 = vadd.f32 %v1233, %v1270
      %v1301 = vadd.f32 %v1234, %v1270
      %v1302 = vadd.f32 %v1235, %v1270
      %v1303 = vadd.f32 %v1236, %v1270
      %v1304 = vadd.f32 %v1237, %v1270
      %v1305 = vadd.f32 %v1238, %v1270
      %v1306 = vadd.f32 %v1239, %v1270
      %v1307 = vadd.f32 %v1240, %v1270
      %v1308 = vadd.f32 %v1241, %v1270
      %v1309 = vadd.f32 %v1242, %v1270
      %v1310 = vadd.f32 %v1243, %v1270
      %v1311 = vadd.f32 %v1244, %v1270
      %v1312 = vadd.f32 %v1245, %v1270
      %v1313 = vadd.f32 %v1246, %v1270
      %v1314 = vadd.f32 %v1247, %v1270
      %v1315 = vadd.f32 %v1248, %v1270
      %v1316 = vadd.f32 %v1249, %v1270
      %v1317 = vadd.f32 %v1250, %v1270
      %v1318 = vadd.f32 %v1251, %v1270
      %v1319 = vadd.f32 %v1252, %v1270
      %v1320 = vadd.f32 %v1253, %v1270
      %v1321 = vadd.f32 %v1254, %v1270
      %v1322 = vadd.f32 %v1255, %v1270
      %v1323 = vadd.f32 %v1256, %v1270
      %v1324 = vadd.f32 %v1257, %v1270
      %v1325 = vadd.f32 %v1258, %v1270
      %v1326 = vadd.f32 %v1259, %v1270
      %v1327 = vadd.f32 %v1260, %v1270
      %v1328 = vadd.f32 %v1261, %v1270
      %v1329 = vadd.f32 %v1262, %v1270
      %v1330 = vadd.f32 %v1263, %v1270
      %v1331 = vadd.f32 %v1264, %v1270
      %v1332 = vadd.f32 %v1265, %v1270
      %v1333 = vadd.f32 %v1266, %v1270
      %v1334 = vadd.f32 %v1267, %v1270
      %v1335 = vadd.f32 %v1268, %v1270
      %v1336 = vmax.f32 %v1272, 0.0
      %v1337 = vmax.f32 %v1273, 0.0
      %v1338 = vmax.f32 %v1274, 0.0
      %v1339 = vmax.f32 %v1275, 0.0
      %v1340 = vmax.f32 %v1276, 0.0
      %v1341 = vmax.f32 %v1277, 0.0
      %v1342 = vmax.f32 %v1278, 0.0
      %v1343 = vmax.f32 %v1279, 0.0
      %v1344 = vmax.f32 %v1280, 0.0
      %v1345 = vmax.f32 %v1281, 0.0
      %v1346 = vmax.f32 %v1282, 0.0
      %v1347 = vmax.f32 %v1283, 0.0
      %v1348 = vmax.f32 %v1284, 0.0
      %v1349 = vmax.f32 %v1285, 0.0
      %v1350 = vmax.f32 %v1286, 0.0
      %v1351 = vmax.f32 %v1287, 0.0
      %v1352 = vmax.f32 %v1288, 0.0
      %v1353 = vmax.f32 %v1289, 0.0
      %v1354 = vmax.f32 %v1290, 0.0
      %v1355 = vmax.f32 %v1291, 0.0
      %v1356 = vmax.f32 %v1292, 0.0
      %v1357 = vmax.f32 %v1293, 0.0
      %v1358 = vmax.f32 %v1294, 0.0
      %v1359 = vmax.f32 %v1295, 0.0
      %v1360 = vmax.f32 %v1296, 0.0
      %v1361 = vmax.f32 %v1297, 0.0
      %v1362 = vmax.f32 %v1298, 0.0
      %v1363 = vmax.f32 %v1299, 0.0
      %v1364 = vmax.f32 %v1300, 0.0
      %v1365 = vmax.f32 %v1301, 0.0
      %v1366 = vmax.f32 %v1302, 0.0
      %v1367 = vmax.f32 %v1303, 0.0
      %v1368 = vmax.f32 %v1304, 0.0
      %v1369 = vmax.f32 %v1305, 0.0
      %v1370 = vmax.f32 %v1306, 0.0
      %v1371 = vmax.f32 %v1307, 0.0
      %v1372 = vmax.f32 %v1308, 0.0
      %v1373 = vmax.f32 %v1309, 0.0
      %v1374 = vmax.f32 %v1310, 0.0
      %v1375 = vmax.f32 %v1311, 0.0
      %v1376 = vmax.f32 %v1312, 0.0
      %v1377 = vmax.f32 %v1313, 0.0
      %v1378 = vmax.f32 %v1314, 0.0
      %v1379 = vmax.f32 %v1315, 0.0
      %v1380 = vmax.f32 %v1316, 0.0
      %v1381 = vmax.f32 %v1317, 0.0
      %v1382 = vmax.f32 %v1318, 0.0
      %v1383 = vmax.f32 %v1319, 0.0
      %v1384 = vmax.f32 %v1320, 0.0
      %v1385 = vmax.f32 %v1321, 0.0
      %v1386 = vmax.f32 %v1322, 0.0
      %v1387 = vmax.f32 %v1323, 0.0
      %v1388 = vmax.f32 %v1324, 0.0
      %v1389 = vmax.f32 %v1325, 0.0
      %v1390 = vmax.f32 %v1326, 0.0
      %v1391 = vmax.f32 %v1327, 0.0
      %v1392 = vmax.f32 %v1328, 0.0
      %v1393 = vmax.f32 %v1329, 0.0
      %v1394 = vmax.f32 %v1330, 0.0
      %v1395 = vmax.f32 %v1331, 0.0
      %v1396 = vmax.f32 %v1332, 0.0
      %v1397 = vmax.f32 %v1333, 0.0
      %v1398 = vmax.f32 %v1334, 0.0
      %v1399 = vmax.f32 %v1335, 0.0
      %v1400 = vpack.c.bf16 %v1336, %v1336
      %v1401 = vpack.c.bf16 %v1337, %v1337
      %v1402 = vpack.c.bf16 %v1338, %v1338
      %v1403 = vpack.c.bf16 %v1339, %v1339
      %v1404 = vpack.c.bf16 %v1340, %v1340
      %v1405 = vpack.c.bf16 %v1341, %v1341
      %v1406 = vpack.c.bf16 %v1342, %v1342
      %v1407 = vpack.c.bf16 %v1343, %v1343
      %v1408 = vpack.c.bf16 %v1344, %v1344
      %v1409 = vpack.c.bf16 %v1345, %v1345
      %v1410 = vpack.c.bf16 %v1346, %v1346
      %v1411 = vpack.c.bf16 %v1347, %v1347
      %v1412 = vpack.c.bf16 %v1348, %v1348
      %v1413 = vpack.c.bf16 %v1349, %v1349
      %v1414 = vpack.c.bf16 %v1350, %v1350
      %v1415 = vpack.c.bf16 %v1351, %v1351
      %v1416 = vpack.c.bf16 %v1352, %v1352
      %v1417 = vpack.c.bf16 %v1353, %v1353
      %v1418 = vpack.c.bf16 %v1354, %v1354
      %v1419 = vpack.c.bf16 %v1355, %v1355
      %v1420 = vpack.c.bf16 %v1356, %v1356
      %v1421 = vpack.c.bf16 %v1357, %v1357
      %v1422 = vpack.c.bf16 %v1358, %v1358
      %v1423 = vpack.c.bf16 %v1359, %v1359
      %v1424 = vpack.c.bf16 %v1360, %v1360
      %v1425 = vpack.c.bf16 %v1361, %v1361
      %v1426 = vpack.c.bf16 %v1362, %v1362
      %v1427 = vpack.c.bf16 %v1363, %v1363
      %v1428 = vpack.c.bf16 %v1364, %v1364
      %v1429 = vpack.c.bf16 %v1365, %v1365
      %v1430 = vpack.c.bf16 %v1366, %v1366
      %v1431 = vpack.c.bf16 %v1367, %v1367
      %v1432 = vpack.c.bf16 %v1368, %v1368
      %v1433 = vpack.c.bf16 %v1369, %v1369
      %v1434 = vpack.c.bf16 %v1370, %v1370
      %v1435 = vpack.c.bf16 %v1371, %v1371
      %v1436 = vpack.c.bf16 %v1372, %v1372
      %v1437 = vpack.c.bf16 %v1373, %v1373
      %v1438 = vpack.c.bf16 %v1374, %v1374
      %v1439 = vpack.c.bf16 %v1375, %v1375
      %v1440 = vpack.c.bf16 %v1376, %v1376
      %v1441 = vpack.c.bf16 %v1377, %v1377
      %v1442 = vpack.c.bf16 %v1378, %v1378
      %v1443 = vpack.c.bf16 %v1379, %v1379
      %v1444 = vpack.c.bf16 %v1380, %v1380
      %v1445 = vpack.c.bf16 %v1381, %v1381
      %v1446 = vpack.c.bf16 %v1382, %v1382
      %v1447 = vpack.c.bf16 %v1383, %v1383
      %v1448 = vpack.c.bf16 %v1384, %v1384
      %v1449 = vpack.c.bf16 %v1385, %v1385
      %v1450 = vpack.c.bf16 %v1386, %v1386
      %v1451 = vpack.c.bf16 %v1387, %v1387
      %v1452 = vpack.c.bf16 %v1388, %v1388
      %v1453 = vpack.c.bf16 %v1389, %v1389
      %v1454 = vpack.c.bf16 %v1390, %v1390
      %v1455 = vpack.c.bf16 %v1391, %v1391
      %v1456 = vpack.c.bf16 %v1392, %v1392
      %v1457 = vpack.c.bf16 %v1393, %v1393
      %v1458 = vpack.c.bf16 %v1394, %v1394
      %v1459 = vpack.c.bf16 %v1395, %v1395
      %v1460 = vpack.c.bf16 %v1396, %v1396
      %v1461 = vpack.c.bf16 %v1397, %v1397
      %v1462 = vpack.c.bf16 %v1398, %v1398
      %v1463 = vpack.c.bf16 %v1399, %v1399
      %vm1464 = vcmask 519168
      %1465 = vst.msk [vmem:[%s4] sm:$0xf] %vm1464, %v1400
      %1466 = vst.msk [vmem:[%s4 + $0x4] sm:$0xf] %vm1464, %v1401
      %1467 = vst.msk [vmem:[%s4 + $0x8] sm:$0xf] %vm1464, %v1402
      %1468 = vst.msk [vmem:[%s4 + $0xc] sm:$0xf] %vm1464, %v1403
      %1469 = vst.msk [vmem:[%s4 + $0x10] sm:$0xf] %vm1464, %v1404
      %1470 = vst.msk [vmem:[%s4 + $0x14] sm:$0xf] %vm1464, %v1405
      %1471 = vst.msk [vmem:[%s4 + $0x18] sm:$0xf] %vm1464, %v1406
      %1472 = vst.msk [vmem:[%s4 + $0x1c] sm:$0xf] %vm1464, %v1407
      %1473 = vst.msk [vmem:[%s4 + $0x20] sm:$0xf] %vm1464, %v1408
      %1474 = vst.msk [vmem:[%s4 + $0x24] sm:$0xf] %vm1464, %v1409
      %1475 = vst.msk [vmem:[%s4 + $0x28] sm:$0xf] %vm1464, %v1410
      %1476 = vst.msk [vmem:[%s4 + $0x2c] sm:$0xf] %vm1464, %v1411
      %1477 = vst.msk [vmem:[%s4 + $0x30] sm:$0xf] %vm1464, %v1412
      %1478 = vst.msk [vmem:[%s4 + $0x34] sm:$0xf] %vm1464, %v1413
      %1479 = vst.msk [vmem:[%s4 + $0x38] sm:$0xf] %vm1464, %v1414
      %1480 = vst.msk [vmem:[%s4 + $0x3c] sm:$0xf] %vm1464, %v1415
      %1481 = vst.msk [vmem:[%s4 + $0x40] sm:$0xf] %vm1464, %v1416
      %1482 = vst.msk [vmem:[%s4 + $0x44] sm:$0xf] %vm1464, %v1417
      %1483 = vst.msk [vmem:[%s4 + $0x48] sm:$0xf] %vm1464, %v1418
      %1484 = vst.msk [vmem:[%s4 + $0x4c] sm:$0xf] %vm1464, %v1419
      %1485 = vst.msk [vmem:[%s4 + $0x50] sm:$0xf] %vm1464, %v1420
      %1486 = vst.msk [vmem:[%s4 + $0x54] sm:$0xf] %vm1464, %v1421
      %1487 = vst.msk [vmem:[%s4 + $0x58] sm:$0xf] %vm1464, %v1422
      %1488 = vst.msk [vmem:[%s4 + $0x5c] sm:$0xf] %vm1464, %v1423
      %1489 = vst.msk [vmem:[%s4 + $0x60] sm:$0xf] %vm1464, %v1424
      %1490 = vst.msk [vmem:[%s4 + $0x64] sm:$0xf] %vm1464, %v1425
      %1491 = vst.msk [vmem:[%s4 + $0x68] sm:$0xf] %vm1464, %v1426
      %1492 = vst.msk [vmem:[%s4 + $0x6c] sm:$0xf] %vm1464, %v1427
      %1493 = vst.msk [vmem:[%s4 + $0x70] sm:$0xf] %vm1464, %v1428
      %1494 = vst.msk [vmem:[%s4 + $0x74] sm:$0xf] %vm1464, %v1429
      %1495 = vst.msk [vmem:[%s4 + $0x78] sm:$0xf] %vm1464, %v1430
      %1496 = vst.msk [vmem:[%s4 + $0x7c] sm:$0xf] %vm1464, %v1431
      %1497 = vst.msk [vmem:[%s4 + $0x80] sm:$0xf] %vm1464, %v1432
      %1498 = vst.msk [vmem:[%s4 + $0x84] sm:$0xf] %vm1464, %v1433
      %1499 = vst.msk [vmem:[%s4 + $0x88] sm:$0xf] %vm1464, %v1434
      %1500 = vst.msk [vmem:[%s4 + $0x8c] sm:$0xf] %vm1464, %v1435
      %1501 = vst.msk [vmem:[%s4 + $0x90] sm:$0xf] %vm1464, %v1436
      %1502 = vst.msk [vmem:[%s4 + $0x94] sm:$0xf] %vm1464, %v1437
      %1503 = vst.msk [vmem:[%s4 + $0x98] sm:$0xf] %vm1464, %v1438
      %1504 = vst.msk [vmem:[%s4 + $0x9c] sm:$0xf] %vm1464, %v1439
      %1505 = vst.msk [vmem:[%s4 + $0xa0] sm:$0xf] %vm1464, %v1440
      %1506 = vst.msk [vmem:[%s4 + $0xa4] sm:$0xf] %vm1464, %v1441
      %1507 = vst.msk [vmem:[%s4 + $0xa8] sm:$0xf] %vm1464, %v1442
      %1508 = vst.msk [vmem:[%s4 + $0xac] sm:$0xf] %vm1464, %v1443
      %1509 = vst.msk [vmem:[%s4 + $0xb0] sm:$0xf] %vm1464, %v1444
      %1510 = vst.msk [vmem:[%s4 + $0xb4] sm:$0xf] %vm1464, %v1445
      %1511 = vst.msk [vmem:[%s4 + $0xb8] sm:$0xf] %vm1464, %v1446
      %1512 = vst.msk [vmem:[%s4 + $0xbc] sm:$0xf] %vm1464, %v1447
      %1513 = vst.msk [vmem:[%s4 + $0xc0] sm:$0xf] %vm1464, %v1448
      %1514 = vst.msk [vmem:[%s4 + $0xc4] sm:$0xf] %vm1464, %v1449
      %1515 = vst.msk [vmem:[%s4 + $0xc8] sm:$0xf] %vm1464, %v1450
      %1516 = vst.msk [vmem:[%s4 + $0xcc] sm:$0xf] %vm1464, %v1451
      %1517 = vst.msk [vmem:[%s4 + $0xd0] sm:$0xf] %vm1464, %v1452
      %1518 = vst.msk [vmem:[%s4 + $0xd4] sm:$0xf] %vm1464, %v1453
      %1519 = vst.msk [vmem:[%s4 + $0xd8] sm:$0xf] %vm1464, %v1454
      %1520 = vst.msk [vmem:[%s4 + $0xdc] sm:$0xf] %vm1464, %v1455
      %1521 = vst.msk [vmem:[%s4 + $0xe0] sm:$0xf] %vm1464, %v1456
      %1522 = vst.msk [vmem:[%s4 + $0xe4] sm:$0xf] %vm1464, %v1457
      %1523 = vst.msk [vmem:[%s4 + $0xe8] sm:$0xf] %vm1464, %v1458
      %1524 = vst.msk [vmem:[%s4 + $0xec] sm:$0xf] %vm1464, %v1459
      %1525 = vst.msk [vmem:[%s4 + $0xf0] sm:$0xf] %vm1464, %v1460
      %1526 = vst.msk [vmem:[%s4 + $0xf4] sm:$0xf] %vm1464, %v1461
      %1527 = vst.msk [vmem:[%s4 + $0xf8] sm:$0xf] %vm1464, %v1462
      %1528 = vst.msk [vmem:[%s4 + $0xfc] sm:$0xf] %vm1464, %v1463
    $region29: #{tpu_custom_call.1} parent=1 // pred_fallthru
      _
    // Predicated region
    $region30: #{tpu_custom_call.1} parent=1 // pred_check
      _
    $region31: #{tpu_custom_call.1} parent=1 // pred_check_branch
      %1530 = sbr.rel (0) target = $region33
    $region32: #{tpu_custom_call.1} parent=1 // pred_region
      _
    $region33: #{tpu_custom_call.1} parent=1 // pred_fallthru
      _
    // Predicated region
    $region34: #{tpu_custom_call.1} parent=1 // pred_check
      _
    $region35: #{tpu_custom_call.1} parent=1 // pred_check_branch
      %1532 = sbr.rel (0) target = $region37
    $region36: #{tpu_custom_call.1} parent=1 // pred_region
      _
    $region37: #{tpu_custom_call.1} parent=1 // pred_fallthru
      _
    %1533 = vsyncpa [#allocation4], 1

</llo_original>
